<compile_context>
chip_gen: v7x
topology: tpu7x:2x2x1
jax: 0.10.0
libtpu: 0.0.40
codegen_flags: <defaults>
</compile_context>

<pallas_src>
import jax
import jax.numpy as jnp
from jax import lax
from jax.experimental import pallas as pl
from jax.experimental.pallas import tpu as pltpu

EPS = 1e-5  # PyTorch InstanceNorm2d default


def _instance_norm_rows(y, gamma, beta):
    # y: (C, P) f32; per-channel stats over the (lane) spatial axis P.
    mean = jnp.mean(y, axis=-1, keepdims=True)
    diff = y - mean
    var = jnp.mean(diff * diff, axis=-1, keepdims=True)   # biased var (PyTorch)
    return diff * lax.rsqrt(var + EPS) * gamma + beta


def _conv1x1(x, w, b):
    # x: (Cin, P), w: (Cout, Cin), b: (Cout, 1) -> (Cout, P)
    # Tiny contraction (Cin = 4..8): unrolled VPU broadcast-FMAs, skip the MXU.
    cin = x.shape[0]
    y = w[:, 0:1] * x[0:1, :]
    for c in range(1, cin):
        y = y + w[:, c:c + 1] * x[c:c + 1, :]
    return y + b


def _make_fused_kernel(k, stride, add_res, H, W, pad, Ho, Wo):
    def kernel(x_ref, w1_ref, b1_ref, g1_ref, bt1_ref, wd_ref, bd_ref,
               g2_ref, bt2_ref, w2_ref, b2_ref, g3_ref, bt3_ref,
               o_ref, xp_ref):
        Ce, Hp, Wp = xp_ref.shape

        # ---- stage 1: 1x1 conv + InstanceNorm + ReLU6 (lane axis = H*W) -------
        x = x_ref[0].astype(jnp.float32)                              # (Cin, H*W)
        y = _conv1x1(x, w1_ref[...], b1_ref[...])                     # (Ce, H*W)
        y = jnp.clip(_instance_norm_rows(y, g1_ref[...], bt1_ref[...]), 0.0, 6.0)

        # ---- stage 2: in-kernel zero padding (VMEM scratch) + depthwise conv --
        xp_ref[...] = jnp.zeros((Ce, Hp, Wp), jnp.float32)
        xp_ref[:, pad:pad + H, pad:pad + W] = y.reshape(Ce, H, W)

        wd = wd_ref[...]                                              # (Ce, k*k)
        acc = jnp.zeros((Ce, Ho, Wo), jnp.float32)
        for dy in range(k):
            for dx in range(k):
                if stride == 1:
                    tap = xp_ref[:, dy:dy + Ho, dx:dx + Wo]
                else:
                    tap = xp_ref[:, pl.ds(dy, Ho, stride), pl.ds(dx, Wo, stride)]
                wt = wd[:, dy * k + dx:dy * k + dx + 1].reshape(Ce, 1, 1)
                acc = acc + tap.astype(jnp.float32) * wt
        acc = acc + bd_ref[...].reshape(Ce, 1, 1)

        # ---- stage 3: InstanceNorm + ReLU6 + 1x1 conv + InstanceNorm (+res) ---
        z = acc.reshape(Ce, Ho * Wo)
        z = jnp.clip(_instance_norm_rows(z, g2_ref[...], bt2_ref[...]), 0.0, 6.0)
        out = _conv1x1(z, w2_ref[...], b2_ref[...])                   # (Cout, Ho*Wo)
        out = _instance_norm_rows(out, g3_ref[...], bt3_ref[...])
        if add_res:
            out = out + x           # valid: stride==1, Cin==Cout, Ho*Wo==H*W
        o_ref[...] = out[None].astype(o_ref.dtype)

    return kernel


def depth_block_apply(x_nchw, params, *, kernel_size, stride, add_final):
    N, Cin, H, W = x_nchw.shape
    Ce = params["w1"].shape[0]
    Cout = params["w2"].shape[0]
    add_res = bool(add_final) and stride == 1 and Cin == Cout
    pad = kernel_size // 2
    Hp, Wp = H + 2 * pad, W + 2 * pad
    Ho = (Hp - kernel_size) // stride + 1
    Wo = (Wp - kernel_size) // stride + 1

    # Channel-major, flattened spatial: NCHW -> (N, C, H*W) is a pure reshape.
    x = x_nchw.reshape(N, Cin, H * W).astype(jnp.float32)

    def rep(shape):
        return pl.BlockSpec(shape, lambda n: (0, 0))   # all params are 2D

    pkeys = ("w1", "b1", "g1", "bt1", "wd", "bd", "g2", "bt2", "w2", "b2", "g3", "bt3")
    kernel = _make_fused_kernel(kernel_size, stride, add_res, H, W, pad, Ho, Wo)

    out = pl.pallas_call(
        kernel,
        out_shape=jax.ShapeDtypeStruct((N, Cout, Ho * Wo), jnp.float32),
        grid=(N,),
        in_specs=[pl.BlockSpec((1, Cin, H * W), lambda n: (n, 0, 0))]
                 + [rep(params[key].shape) for key in pkeys],
        out_specs=pl.BlockSpec((1, Cout, Ho * Wo), lambda n: (n, 0, 0)),
        scratch_shapes=[pltpu.VMEM((Ce, Hp, Wp), jnp.float32)],   # padded activation
        compiler_params=pltpu.CompilerParams(
            dimension_semantics=("parallel",)),   # batch axis: megacore split on v7x
    )(x, *[params[key] for key in pkeys])

    return out.reshape(N, Cout, Ho, Wo)


def init_params(key, input_channel, input_expansion, kernel_size, output_channel):
    Ce = int(input_channel * input_expansion)
    ks = jax.random.split(key, 6)

    def rnd(k, shape, scale=0.2):
        return jax.random.normal(k, shape, jnp.float32) * scale

    return {
        # 1x1 conv1: weight (Ce, Cin), bias (Ce, 1)
        "w1": rnd(ks[0], (Ce, input_channel)),
        "b1": rnd(ks[1], (Ce, 1)),
        # InstanceNorm2d(affine=True) default init: gamma=1, beta=0
        "g1": jnp.ones((Ce, 1), jnp.float32), "bt1": jnp.zeros((Ce, 1), jnp.float32),
        # depthwise conv: weight (Ce, k*k) [row-major over (dy, dx)], bias (Ce, 1)
        "wd": rnd(ks[2], (Ce, kernel_size * kernel_size)),
        "bd": rnd(ks[3], (Ce, 1)),
        "g2": jnp.ones((Ce, 1), jnp.float32), "bt2": jnp.zeros((Ce, 1), jnp.float32),
        # 1x1 conv2: weight (Cout, Ce), bias (Cout, 1)
        "w2": rnd(ks[4], (output_channel, Ce)),
        "b2": rnd(ks[5], (output_channel, 1)),
        "g3": jnp.ones((output_channel, 1), jnp.float32),
        "bt3": jnp.zeros((output_channel, 1), jnp.float32),
    }


def _reference_depth_block(x, p, *, kernel_size, stride, add_final):
    # Pure-JAX NCHW reference mirroring the PyTorch module (validation only).
    N, Cin, H, W = x.shape
    Ce = p["w1"].shape[0]
    Cout = p["w2"].shape[0]
    add_res = bool(add_final) and stride == 1 and Cin == Cout
    pad = kernel_size // 2
    hi = lax.Precision.HIGHEST

    def inorm(t, g, b):
        m = jnp.mean(t, axis=(2, 3), keepdims=True)
        v = jnp.mean((t - m) ** 2, axis=(2, 3), keepdims=True)
        return (t - m) / jnp.sqrt(v + EPS) * g.reshape(1, -1, 1, 1) + b.reshape(1, -1, 1, 1)

    y = jnp.einsum("nchw,ec->nehw", x, p["w1"], precision=hi) + p["b1"].reshape(1, Ce, 1, 1)
    y = jnp.clip(inorm(y, p["g1"], p["bt1"]), 0.0, 6.0)
    wdw = p["wd"].reshape(Ce, 1, kernel_size, kernel_size)
    y = lax.conv_general_dilated(
        y, wdw, window_strides=(stride, stride),
        padding=((pad, pad), (pad, pad)),
        dimension_numbers=("NCHW", "OIHW", "NCHW"),
        feature_group_count=Ce, precision=hi) + p["bd"].reshape(1, Ce, 1, 1)
    y = jnp.clip(inorm(y, p["g2"], p["bt2"]), 0.0, 6.0)
    z = jnp.einsum("nehw,oe->nohw", y, p["w2"], precision=hi) + p["b2"].reshape(1, Cout, 1, 1)
    z = inorm(z, p["g3"], p["bt3"])
    if add_res:
        z = z + x
    return z


if __name__ == "__main__":
    key = jax.random.PRNGKey(0)
    k_in, k_par = jax.random.split(key)

    # detph_block(input_channel=4, input_expansion=2, kernel_size=3, stride=1,
    #             output_channel=4, add_final=True)
    N, Cin, H, W = 2, 4, 16, 16
    expansion, ksz, stride, Cout = 2, 3, 1, 4

    x = jax.random.normal(k_in, (N, Cin, H, W), jnp.float32)
    params = init_params(k_par, Cin, expansion, ksz, Cout)

    out = depth_block_apply(x, params, kernel_size=ksz, stride=stride, add_final=True)
    out = jax.block_until_ready(out)
    assert out.shape == (N, Cout, H, W), out.shape
    assert jnp.isfinite(out).all()

    ref = _reference_depth_block(x, params, kernel_size=ksz, stride=stride, add_final=True)
    err = float(jnp.max(jnp.abs(out - ref)))
    assert err < 1e-3, f"max abs err vs reference: {err}"
    print("KERNEL_OK")
</pallas_src>

<mosaic_0001>
module attributes {stable_mosaic.version = 11 : i64} {
  func.func @kernel(%arg0: i32, %arg1: memref<1x4x256xf32, #tpu.memory_space<vmem>>, %arg2: memref<8x4xf32, #tpu.memory_space<vmem>>, %arg3: memref<8x1xf32, #tpu.memory_space<vmem>>, %arg4: memref<8x1xf32, #tpu.memory_space<vmem>>, %arg5: memref<8x1xf32, #tpu.memory_space<vmem>>, %arg6: memref<8x9xf32, #tpu.memory_space<vmem>>, %arg7: memref<8x1xf32, #tpu.memory_space<vmem>>, %arg8: memref<8x1xf32, #tpu.memory_space<vmem>>, %arg9: memref<8x1xf32, #tpu.memory_space<vmem>>, %arg10: memref<4x8xf32, #tpu.memory_space<vmem>>, %arg11: memref<4x1xf32, #tpu.memory_space<vmem>>, %arg12: memref<4x1xf32, #tpu.memory_space<vmem>>, %arg13: memref<4x1xf32, #tpu.memory_space<vmem>>, %arg14: memref<1x4x256xf32, #tpu.memory_space<vmem>>, %arg15: memref<8x18x18xf32, #tpu.memory_space<vmem>>) attributes {dimension_semantics = [#tpu.dimension_semantics<parallel>], iteration_bounds = array<i64: 2>, scalar_prefetch = 0 : i64, scratch_operands = 1 : i64, tpu.core_type = #tpu.core_type<tc>, window_params = [{transform_indices = @transform_0, window_bounds = array<i64: 1, 4, 256>}, {pipeline_mode = #tpu.pipeline_mode<synchronous>, transform_indices = @transform_1, window_bounds = array<i64: 8, 4>}, {pipeline_mode = #tpu.pipeline_mode<synchronous>, transform_indices = @transform_2, window_bounds = array<i64: 8, 1>}, {pipeline_mode = #tpu.pipeline_mode<synchronous>, transform_indices = @transform_3, window_bounds = array<i64: 8, 1>}, {pipeline_mode = #tpu.pipeline_mode<synchronous>, transform_indices = @transform_4, window_bounds = array<i64: 8, 1>}, {pipeline_mode = #tpu.pipeline_mode<synchronous>, transform_indices = @transform_5, window_bounds = array<i64: 8, 9>}, {pipeline_mode = #tpu.pipeline_mode<synchronous>, transform_indices = @transform_6, window_bounds = array<i64: 8, 1>}, {pipeline_mode = #tpu.pipeline_mode<synchronous>, transform_indices = @transform_7, window_bounds = array<i64: 8, 1>}, {pipeline_mode = #tpu.pipeline_mode<synchronous>, transform_indices = @transform_8, window_bounds = array<i64: 8, 1>}, {pipeline_mode = #tpu.pipeline_mode<synchronous>, transform_indices = @transform_9, window_bounds = array<i64: 4, 8>}, {pipeline_mode = #tpu.pipeline_mode<synchronous>, transform_indices = @transform_10, window_bounds = array<i64: 4, 1>}, {pipeline_mode = #tpu.pipeline_mode<synchronous>, transform_indices = @transform_11, window_bounds = array<i64: 4, 1>}, {pipeline_mode = #tpu.pipeline_mode<synchronous>, transform_indices = @transform_12, window_bounds = array<i64: 4, 1>}, {transform_indices = @transform_13, window_bounds = array<i64: 1, 4, 256>}]} {
    %c0 = arith.constant 0 : index
    %c0_0 = arith.constant 0 : index
    %c0_1 = arith.constant 0 : index
    %0 = vector.load %arg1[%c0, %c0_0, %c0_1] : memref<1x4x256xf32, #tpu.memory_space<vmem>>, vector<1x4x256xf32>
    %1 = vector.shape_cast %0 : vector<1x4x256xf32> to vector<4x256xf32>
    %c0_2 = arith.constant 0 : index
    %c0_3 = arith.constant 0 : index
    %2 = vector.load %arg2[%c0_2, %c0_3] : memref<8x4xf32, #tpu.memory_space<vmem>>, vector<8x4xf32>
    %c0_4 = arith.constant 0 : index
    %c0_5 = arith.constant 0 : index
    %3 = vector.load %arg3[%c0_4, %c0_5] : memref<8x1xf32, #tpu.memory_space<vmem>>, vector<8x1xf32>
    %4 = vector.extract_strided_slice %2 {offsets = [0, 0], sizes = [8, 1], strides = [1, 1]} : vector<8x4xf32> to vector<8x1xf32>
    %5 = vector.extract_strided_slice %1 {offsets = [0, 0], sizes = [1, 256], strides = [1, 1]} : vector<4x256xf32> to vector<1x256xf32>
    %6 = vector.broadcast %4 : vector<8x1xf32> to vector<8x256xf32>
    %7 = vector.broadcast %5 : vector<1x256xf32> to vector<8x256xf32>
    %8 = arith.mulf %6, %7 : vector<8x256xf32>
    %9 = vector.extract_strided_slice %2 {offsets = [0, 1], sizes = [8, 1], strides = [1, 1]} : vector<8x4xf32> to vector<8x1xf32>
    %10 = vector.extract_strided_slice %1 {offsets = [1, 0], sizes = [1, 256], strides = [1, 1]} : vector<4x256xf32> to vector<1x256xf32>
    %11 = vector.broadcast %9 : vector<8x1xf32> to vector<8x256xf32>
    %12 = vector.broadcast %10 : vector<1x256xf32> to vector<8x256xf32>
    %13 = arith.mulf %11, %12 : vector<8x256xf32>
    %14 = arith.addf %8, %13 : vector<8x256xf32>
    %15 = vector.extract_strided_slice %2 {offsets = [0, 2], sizes = [8, 1], strides = [1, 1]} : vector<8x4xf32> to vector<8x1xf32>
    %16 = vector.extract_strided_slice %1 {offsets = [2, 0], sizes = [1, 256], strides = [1, 1]} : vector<4x256xf32> to vector<1x256xf32>
    %17 = vector.broadcast %15 : vector<8x1xf32> to vector<8x256xf32>
    %18 = vector.broadcast %16 : vector<1x256xf32> to vector<8x256xf32>
    %19 = arith.mulf %17, %18 : vector<8x256xf32>
    %20 = arith.addf %14, %19 : vector<8x256xf32>
    %21 = vector.extract_strided_slice %2 {offsets = [0, 3], sizes = [8, 1], strides = [1, 1]} : vector<8x4xf32> to vector<8x1xf32>
    %22 = vector.extract_strided_slice %1 {offsets = [3, 0], sizes = [1, 256], strides = [1, 1]} : vector<4x256xf32> to vector<1x256xf32>
    %23 = vector.broadcast %21 : vector<8x1xf32> to vector<8x256xf32>
    %24 = vector.broadcast %22 : vector<1x256xf32> to vector<8x256xf32>
    %25 = arith.mulf %23, %24 : vector<8x256xf32>
    %26 = arith.addf %20, %25 : vector<8x256xf32>
    %27 = vector.broadcast %3 : vector<8x1xf32> to vector<8x256xf32>
    %28 = arith.addf %26, %27 : vector<8x256xf32>
    %c0_6 = arith.constant 0 : index
    %c0_7 = arith.constant 0 : index
    %29 = vector.load %arg4[%c0_6, %c0_7] : memref<8x1xf32, #tpu.memory_space<vmem>>, vector<8x1xf32>
    %c0_8 = arith.constant 0 : index
    %c0_9 = arith.constant 0 : index
    %30 = vector.load %arg5[%c0_8, %c0_9] : memref<8x1xf32, #tpu.memory_space<vmem>>, vector<8x1xf32>
    %cst = arith.constant dense<0.000000e+00> : vector<8xf32>
    %31 = vector.multi_reduction <add>, %28, %cst [1] : vector<8x256xf32> to vector<8xf32>
    %32 = vector.shape_cast %31 : vector<8xf32> to vector<8x1xf32>
    %cst_10 = arith.constant 2.560000e+02 : f32
    %33 = vector.broadcast %cst_10 : f32 to vector<8x1xf32>
    %34 = arith.divf %32, %33 : vector<8x1xf32>
    %35 = vector.broadcast %34 : vector<8x1xf32> to vector<8x256xf32>
    %36 = arith.subf %28, %35 : vector<8x256xf32>
    %37 = arith.mulf %36, %36 : vector<8x256xf32>
    %cst_11 = arith.constant dense<0.000000e+00> : vector<8xf32>
    %38 = vector.multi_reduction <add>, %37, %cst_11 [1] : vector<8x256xf32> to vector<8xf32>
    %39 = vector.shape_cast %38 : vector<8xf32> to vector<8x1xf32>
    %cst_12 = arith.constant 2.560000e+02 : f32
    %40 = vector.broadcast %cst_12 : f32 to vector<8x1xf32>
    %41 = arith.divf %39, %40 : vector<8x1xf32>
    %cst_13 = arith.constant 9.99999974E-6 : f32
    %42 = vector.broadcast %cst_13 : f32 to vector<8x1xf32>
    %43 = arith.addf %41, %42 : vector<8x1xf32>
    %44 = math.rsqrt %43 : vector<8x1xf32>
    %45 = vector.broadcast %44 : vector<8x1xf32> to vector<8x256xf32>
    %46 = arith.mulf %36, %45 : vector<8x256xf32>
    %47 = vector.broadcast %29 : vector<8x1xf32> to vector<8x256xf32>
    %48 = arith.mulf %46, %47 : vector<8x256xf32>
    %49 = vector.broadcast %30 : vector<8x1xf32> to vector<8x256xf32>
    %50 = arith.addf %48, %49 : vector<8x256xf32>
    %cst_14 = arith.constant 0.000000e+00 : f32
    %cst_15 = arith.constant 6.000000e+00 : f32
    %51 = vector.broadcast %cst_14 : f32 to vector<8x256xf32>
    %52 = arith.maximumf %51, %50 : vector<8x256xf32>
    %53 = vector.broadcast %cst_15 : f32 to vector<8x256xf32>
    %54 = arith.minimumf %53, %52 : vector<8x256xf32>
    %cst_16 = arith.constant 0.000000e+00 : f32
    %55 = vector.broadcast %cst_16 : f32 to vector<8x18x18xf32>
    %c0_17 = arith.constant 0 : index
    %c0_18 = arith.constant 0 : index
    %c0_19 = arith.constant 0 : index
    %56 = vector.load %arg15[%c0_17, %c0_18, %c0_19] : memref<8x18x18xf32, #tpu.memory_space<vmem>>, vector<8x18x18xf32>
    tpu.vector_store %arg15[%c0_17, %c0_18, %c0_19], %55 {strides = array<i32>} : memref<8x18x18xf32, #tpu.memory_space<vmem>>, vector<8x18x18xf32>,
    %57 = vector.shape_cast %54 : vector<8x256xf32> to vector<8x16x16xf32>
    %c0_20 = arith.constant 0 : index
    %c1 = arith.constant 1 : index
    %c1_21 = arith.constant 1 : index
    %58 = vector.load %arg15[%c0_20, %c1, %c1_21] : memref<8x18x18xf32, #tpu.memory_space<vmem>>, vector<8x16x16xf32>
    tpu.vector_store %arg15[%c0_20, %c1, %c1_21], %57 {strides = array<i32>} : memref<8x18x18xf32, #tpu.memory_space<vmem>>, vector<8x16x16xf32>,
    %c0_22 = arith.constant 0 : index
    %c0_23 = arith.constant 0 : index
    %59 = vector.load %arg6[%c0_22, %c0_23] : memref<8x9xf32, #tpu.memory_space<vmem>>, vector<8x9xf32>
    %cst_24 = arith.constant 0.000000e+00 : f32
    %60 = vector.broadcast %cst_24 : f32 to vector<8x16x16xf32>
    %c0_25 = arith.constant 0 : index
    %c0_26 = arith.constant 0 : index
    %c0_27 = arith.constant 0 : index
    %61 = vector.load %arg15[%c0_25, %c0_26, %c0_27] : memref<8x18x18xf32, #tpu.memory_space<vmem>>, vector<8x16x16xf32>
    %62 = vector.extract_strided_slice %59 {offsets = [0, 0], sizes = [8, 1], strides = [1, 1]} : vector<8x9xf32> to vector<8x1xf32>
    %63 = vector.shape_cast %62 : vector<8x1xf32> to vector<8x1x1xf32>
    %64 = vector.broadcast %63 : vector<8x1x1xf32> to vector<8x16x16xf32>
    %65 = arith.mulf %61, %64 : vector<8x16x16xf32>
    %66 = arith.addf %60, %65 : vector<8x16x16xf32>
    %c0_28 = arith.constant 0 : index
    %c0_29 = arith.constant 0 : index
    %c1_30 = arith.constant 1 : index
    %67 = vector.load %arg15[%c0_28, %c0_29, %c1_30] : memref<8x18x18xf32, #tpu.memory_space<vmem>>, vector<8x16x16xf32>
    %68 = vector.extract_strided_slice %59 {offsets = [0, 1], sizes = [8, 1], strides = [1, 1]} : vector<8x9xf32> to vector<8x1xf32>
    %69 = vector.shape_cast %68 : vector<8x1xf32> to vector<8x1x1xf32>
    %70 = vector.broadcast %69 : vector<8x1x1xf32> to vector<8x16x16xf32>
    %71 = arith.mulf %67, %70 : vector<8x16x16xf32>
    %72 = arith.addf %66, %71 : vector<8x16x16xf32>
    %c0_31 = arith.constant 0 : index
    %c0_32 = arith.constant 0 : index
    %c2 = arith.constant 2 : index
    %73 = vector.load %arg15[%c0_31, %c0_32, %c2] : memref<8x18x18xf32, #tpu.memory_space<vmem>>, vector<8x16x16xf32>
    %74 = vector.extract_strided_slice %59 {offsets = [0, 2], sizes = [8, 1], strides = [1, 1]} : vector<8x9xf32> to vector<8x1xf32>
    %75 = vector.shape_cast %74 : vector<8x1xf32> to vector<8x1x1xf32>
    %76 = vector.broadcast %75 : vector<8x1x1xf32> to vector<8x16x16xf32>
    %77 = arith.mulf %73, %76 : vector<8x16x16xf32>
    %78 = arith.addf %72, %77 : vector<8x16x16xf32>
    %c0_33 = arith.constant 0 : index
    %c1_34 = arith.constant 1 : index
    %c0_35 = arith.constant 0 : index
    %79 = vector.load %arg15[%c0_33, %c1_34, %c0_35] : memref<8x18x18xf32, #tpu.memory_space<vmem>>, vector<8x16x16xf32>
    %80 = vector.extract_strided_slice %59 {offsets = [0, 3], sizes = [8, 1], strides = [1, 1]} : vector<8x9xf32> to vector<8x1xf32>
    %81 = vector.shape_cast %80 : vector<8x1xf32> to vector<8x1x1xf32>
    %82 = vector.broadcast %81 : vector<8x1x1xf32> to vector<8x16x16xf32>
    %83 = arith.mulf %79, %82 : vector<8x16x16xf32>
    %84 = arith.addf %78, %83 : vector<8x16x16xf32>
    %c0_36 = arith.constant 0 : index
    %c1_37 = arith.constant 1 : index
    %c1_38 = arith.constant 1 : index
    %85 = vector.load %arg15[%c0_36, %c1_37, %c1_38] : memref<8x18x18xf32, #tpu.memory_space<vmem>>, vector<8x16x16xf32>
    %86 = vector.extract_strided_slice %59 {offsets = [0, 4], sizes = [8, 1], strides = [1, 1]} : vector<8x9xf32> to vector<8x1xf32>
    %87 = vector.shape_cast %86 : vector<8x1xf32> to vector<8x1x1xf32>
    %88 = vector.broadcast %87 : vector<8x1x1xf32> to vector<8x16x16xf32>
    %89 = arith.mulf %85, %88 : vector<8x16x16xf32>
    %90 = arith.addf %84, %89 : vector<8x16x16xf32>
    %c0_39 = arith.constant 0 : index
    %c1_40 = arith.constant 1 : index
    %c2_41 = arith.constant 2 : index
    %91 = vector.load %arg15[%c0_39, %c1_40, %c2_41] : memref<8x18x18xf32, #tpu.memory_space<vmem>>, vector<8x16x16xf32>
    %92 = vector.extract_strided_slice %59 {offsets = [0, 5], sizes = [8, 1], strides = [1, 1]} : vector<8x9xf32> to vector<8x1xf32>
    %93 = vector.shape_cast %92 : vector<8x1xf32> to vector<8x1x1xf32>
    %94 = vector.broadcast %93 : vector<8x1x1xf32> to vector<8x16x16xf32>
    %95 = arith.mulf %91, %94 : vector<8x16x16xf32>
    %96 = arith.addf %90, %95 : vector<8x16x16xf32>
    %c0_42 = arith.constant 0 : index
    %c2_43 = arith.constant 2 : index
    %c0_44 = arith.constant 0 : index
    %97 = vector.load %arg15[%c0_42, %c2_43, %c0_44] : memref<8x18x18xf32, #tpu.memory_space<vmem>>, vector<8x16x16xf32>
    %98 = vector.extract_strided_slice %59 {offsets = [0, 6], sizes = [8, 1], strides = [1, 1]} : vector<8x9xf32> to vector<8x1xf32>
    %99 = vector.shape_cast %98 : vector<8x1xf32> to vector<8x1x1xf32>
    %100 = vector.broadcast %99 : vector<8x1x1xf32> to vector<8x16x16xf32>
    %101 = arith.mulf %97, %100 : vector<8x16x16xf32>
    %102 = arith.addf %96, %101 : vector<8x16x16xf32>
    %c0_45 = arith.constant 0 : index
    %c2_46 = arith.constant 2 : index
    %c1_47 = arith.constant 1 : index
    %103 = vector.load %arg15[%c0_45, %c2_46, %c1_47] : memref<8x18x18xf32, #tpu.memory_space<vmem>>, vector<8x16x16xf32>
    %104 = vector.extract_strided_slice %59 {offsets = [0, 7], sizes = [8, 1], strides = [1, 1]} : vector<8x9xf32> to vector<8x1xf32>
    %105 = vector.shape_cast %104 : vector<8x1xf32> to vector<8x1x1xf32>
    %106 = vector.broadcast %105 : vector<8x1x1xf32> to vector<8x16x16xf32>
    %107 = arith.mulf %103, %106 : vector<8x16x16xf32>
    %108 = arith.addf %102, %107 : vector<8x16x16xf32>
    %c0_48 = arith.constant 0 : index
    %c2_49 = arith.constant 2 : index
    %c2_50 = arith.constant 2 : index
    %109 = vector.load %arg15[%c0_48, %c2_49, %c2_50] : memref<8x18x18xf32, #tpu.memory_space<vmem>>, vector<8x16x16xf32>
    %110 = vector.extract_strided_slice %59 {offsets = [0, 8], sizes = [8, 1], strides = [1, 1]} : vector<8x9xf32> to vector<8x1xf32>
    %111 = vector.shape_cast %110 : vector<8x1xf32> to vector<8x1x1xf32>
    %112 = vector.broadcast %111 : vector<8x1x1xf32> to vector<8x16x16xf32>
    %113 = arith.mulf %109, %112 : vector<8x16x16xf32>
    %114 = arith.addf %108, %113 : vector<8x16x16xf32>
    %c0_51 = arith.constant 0 : index
    %c0_52 = arith.constant 0 : index
    %115 = vector.load %arg7[%c0_51, %c0_52] : memref<8x1xf32, #tpu.memory_space<vmem>>, vector<8x1xf32>
    %116 = vector.shape_cast %115 : vector<8x1xf32> to vector<8x1x1xf32>
    %117 = vector.broadcast %116 : vector<8x1x1xf32> to vector<8x16x16xf32>
    %118 = arith.addf %114, %117 : vector<8x16x16xf32>
    %119 = vector.shape_cast %118 : vector<8x16x16xf32> to vector<8x256xf32>
    %c0_53 = arith.constant 0 : index
    %c0_54 = arith.constant 0 : index
    %120 = vector.load %arg8[%c0_53, %c0_54] : memref<8x1xf32, #tpu.memory_space<vmem>>, vector<8x1xf32>
    %c0_55 = arith.constant 0 : index
    %c0_56 = arith.constant 0 : index
    %121 = vector.load %arg9[%c0_55, %c0_56] : memref<8x1xf32, #tpu.memory_space<vmem>>, vector<8x1xf32>
    %cst_57 = arith.constant dense<0.000000e+00> : vector<8xf32>
    %122 = vector.multi_reduction <add>, %119, %cst_57 [1] : vector<8x256xf32> to vector<8xf32>
    %123 = vector.shape_cast %122 : vector<8xf32> to vector<8x1xf32>
    %cst_58 = arith.constant 2.560000e+02 : f32
    %124 = vector.broadcast %cst_58 : f32 to vector<8x1xf32>
    %125 = arith.divf %123, %124 : vector<8x1xf32>
    %126 = vector.broadcast %125 : vector<8x1xf32> to vector<8x256xf32>
    %127 = arith.subf %119, %126 : vector<8x256xf32>
    %128 = arith.mulf %127, %127 : vector<8x256xf32>
    %cst_59 = arith.constant dense<0.000000e+00> : vector<8xf32>
    %129 = vector.multi_reduction <add>, %128, %cst_59 [1] : vector<8x256xf32> to vector<8xf32>
    %130 = vector.shape_cast %129 : vector<8xf32> to vector<8x1xf32>
    %cst_60 = arith.constant 2.560000e+02 : f32
    %131 = vector.broadcast %cst_60 : f32 to vector<8x1xf32>
    %132 = arith.divf %130, %131 : vector<8x1xf32>
    %cst_61 = arith.constant 9.99999974E-6 : f32
    %133 = vector.broadcast %cst_61 : f32 to vector<8x1xf32>
    %134 = arith.addf %132, %133 : vector<8x1xf32>
    %135 = math.rsqrt %134 : vector<8x1xf32>
    %136 = vector.broadcast %135 : vector<8x1xf32> to vector<8x256xf32>
    %137 = arith.mulf %127, %136 : vector<8x256xf32>
    %138 = vector.broadcast %120 : vector<8x1xf32> to vector<8x256xf32>
    %139 = arith.mulf %137, %138 : vector<8x256xf32>
    %140 = vector.broadcast %121 : vector<8x1xf32> to vector<8x256xf32>
    %141 = arith.addf %139, %140 : vector<8x256xf32>
    %cst_62 = arith.constant 0.000000e+00 : f32
    %cst_63 = arith.constant 6.000000e+00 : f32
    %142 = vector.broadcast %cst_62 : f32 to vector<8x256xf32>
    %143 = arith.maximumf %142, %141 : vector<8x256xf32>
    %144 = vector.broadcast %cst_63 : f32 to vector<8x256xf32>
    %145 = arith.minimumf %144, %143 : vector<8x256xf32>
    %c0_64 = arith.constant 0 : index
    %c0_65 = arith.constant 0 : index
    %146 = vector.load %arg10[%c0_64, %c0_65] : memref<4x8xf32, #tpu.memory_space<vmem>>, vector<4x8xf32>
    %c0_66 = arith.constant 0 : index
    %c0_67 = arith.constant 0 : index
    %147 = vector.load %arg11[%c0_66, %c0_67] : memref<4x1xf32, #tpu.memory_space<vmem>>, vector<4x1xf32>
    %148 = vector.extract_strided_slice %146 {offsets = [0, 0], sizes = [4, 1], strides = [1, 1]} : vector<4x8xf32> to vector<4x1xf32>
    %149 = vector.extract_strided_slice %145 {offsets = [0, 0], sizes = [1, 256], strides = [1, 1]} : vector<8x256xf32> to vector<1x256xf32>
    %150 = vector.broadcast %148 : vector<4x1xf32> to vector<4x256xf32>
    %151 = vector.broadcast %149 : vector<1x256xf32> to vector<4x256xf32>
    %152 = arith.mulf %150, %151 : vector<4x256xf32>
    %153 = vector.extract_strided_slice %146 {offsets = [0, 1], sizes = [4, 1], strides = [1, 1]} : vector<4x8xf32> to vector<4x1xf32>
    %154 = vector.extract_strided_slice %145 {offsets = [1, 0], sizes = [1, 256], strides = [1, 1]} : vector<8x256xf32> to vector<1x256xf32>
    %155 = vector.broadcast %153 : vector<4x1xf32> to vector<4x256xf32>
    %156 = vector.broadcast %154 : vector<1x256xf32> to vector<4x256xf32>
    %157 = arith.mulf %155, %156 : vector<4x256xf32>
    %158 = arith.addf %152, %157 : vector<4x256xf32>
    %159 = vector.extract_strided_slice %146 {offsets = [0, 2], sizes = [4, 1], strides = [1, 1]} : vector<4x8xf32> to vector<4x1xf32>
    %160 = vector.extract_strided_slice %145 {offsets = [2, 0], sizes = [1, 256], strides = [1, 1]} : vector<8x256xf32> to vector<1x256xf32>
    %161 = vector.broadcast %159 : vector<4x1xf32> to vector<4x256xf32>
    %162 = vector.broadcast %160 : vector<1x256xf32> to vector<4x256xf32>
    %163 = arith.mulf %161, %162 : vector<4x256xf32>
    %164 = arith.addf %158, %163 : vector<4x256xf32>
    %165 = vector.extract_strided_slice %146 {offsets = [0, 3], sizes = [4, 1], strides = [1, 1]} : vector<4x8xf32> to vector<4x1xf32>
    %166 = vector.extract_strided_slice %145 {offsets = [3, 0], sizes = [1, 256], strides = [1, 1]} : vector<8x256xf32> to vector<1x256xf32>
    %167 = vector.broadcast %165 : vector<4x1xf32> to vector<4x256xf32>
    %168 = vector.broadcast %166 : vector<1x256xf32> to vector<4x256xf32>
    %169 = arith.mulf %167, %168 : vector<4x256xf32>
    %170 = arith.addf %164, %169 : vector<4x256xf32>
    %171 = vector.extract_strided_slice %146 {offsets = [0, 4], sizes = [4, 1], strides = [1, 1]} : vector<4x8xf32> to vector<4x1xf32>
    %172 = vector.extract_strided_slice %145 {offsets = [4, 0], sizes = [1, 256], strides = [1, 1]} : vector<8x256xf32> to vector<1x256xf32>
    %173 = vector.broadcast %171 : vector<4x1xf32> to vector<4x256xf32>
    %174 = vector.broadcast %172 : vector<1x256xf32> to vector<4x256xf32>
    %175 = arith.mulf %173, %174 : vector<4x256xf32>
    %176 = arith.addf %170, %175 : vector<4x256xf32>
    %177 = vector.extract_strided_slice %146 {offsets = [0, 5], sizes = [4, 1], strides = [1, 1]} : vector<4x8xf32> to vector<4x1xf32>
    %178 = vector.extract_strided_slice %145 {offsets = [5, 0], sizes = [1, 256], strides = [1, 1]} : vector<8x256xf32> to vector<1x256xf32>
    %179 = vector.broadcast %177 : vector<4x1xf32> to vector<4x256xf32>
    %180 = vector.broadcast %178 : vector<1x256xf32> to vector<4x256xf32>
    %181 = arith.mulf %179, %180 : vector<4x256xf32>
    %182 = arith.addf %176, %181 : vector<4x256xf32>
    %183 = vector.extract_strided_slice %146 {offsets = [0, 6], sizes = [4, 1], strides = [1, 1]} : vector<4x8xf32> to vector<4x1xf32>
    %184 = vector.extract_strided_slice %145 {offsets = [6, 0], sizes = [1, 256], strides = [1, 1]} : vector<8x256xf32> to vector<1x256xf32>
    %185 = vector.broadcast %183 : vector<4x1xf32> to vector<4x256xf32>
    %186 = vector.broadcast %184 : vector<1x256xf32> to vector<4x256xf32>
    %187 = arith.mulf %185, %186 : vector<4x256xf32>
    %188 = arith.addf %182, %187 : vector<4x256xf32>
    %189 = vector.extract_strided_slice %146 {offsets = [0, 7], sizes = [4, 1], strides = [1, 1]} : vector<4x8xf32> to vector<4x1xf32>
    %190 = vector.extract_strided_slice %145 {offsets = [7, 0], sizes = [1, 256], strides = [1, 1]} : vector<8x256xf32> to vector<1x256xf32>
    %191 = vector.broadcast %189 : vector<4x1xf32> to vector<4x256xf32>
    %192 = vector.broadcast %190 : vector<1x256xf32> to vector<4x256xf32>
    %193 = arith.mulf %191, %192 : vector<4x256xf32>
    %194 = arith.addf %188, %193 : vector<4x256xf32>
    %195 = vector.broadcast %147 : vector<4x1xf32> to vector<4x256xf32>
    %196 = arith.addf %194, %195 : vector<4x256xf32>
    %c0_68 = arith.constant 0 : index
    %c0_69 = arith.constant 0 : index
    %197 = vector.load %arg12[%c0_68, %c0_69] : memref<4x1xf32, #tpu.memory_space<vmem>>, vector<4x1xf32>
    %c0_70 = arith.constant 0 : index
    %c0_71 = arith.constant 0 : index
    %198 = vector.load %arg13[%c0_70, %c0_71] : memref<4x1xf32, #tpu.memory_space<vmem>>, vector<4x1xf32>
    %cst_72 = arith.constant dense<0.000000e+00> : vector<4xf32>
    %199 = vector.multi_reduction <add>, %196, %cst_72 [1] : vector<4x256xf32> to vector<4xf32>
    %200 = vector.shape_cast %199 : vector<4xf32> to vector<4x1xf32>
    %cst_73 = arith.constant 2.560000e+02 : f32
    %201 = vector.broadcast %cst_73 : f32 to vector<4x1xf32>
    %202 = arith.divf %200, %201 : vector<4x1xf32>
    %203 = vector.broadcast %202 : vector<4x1xf32> to vector<4x256xf32>
    %204 = arith.subf %196, %203 : vector<4x256xf32>
    %205 = arith.mulf %204, %204 : vector<4x256xf32>
    %cst_74 = arith.constant dense<0.000000e+00> : vector<4xf32>
    %206 = vector.multi_reduction <add>, %205, %cst_74 [1] : vector<4x256xf32> to vector<4xf32>
    %207 = vector.shape_cast %206 : vector<4xf32> to vector<4x1xf32>
    %cst_75 = arith.constant 2.560000e+02 : f32
    %208 = vector.broadcast %cst_75 : f32 to vector<4x1xf32>
    %209 = arith.divf %207, %208 : vector<4x1xf32>
    %cst_76 = arith.constant 9.99999974E-6 : f32
    %210 = vector.broadcast %cst_76 : f32 to vector<4x1xf32>
    %211 = arith.addf %209, %210 : vector<4x1xf32>
    %212 = math.rsqrt %211 : vector<4x1xf32>
    %213 = vector.broadcast %212 : vector<4x1xf32> to vector<4x256xf32>
    %214 = arith.mulf %204, %213 : vector<4x256xf32>
    %215 = vector.broadcast %197 : vector<4x1xf32> to vector<4x256xf32>
    %216 = arith.mulf %214, %215 : vector<4x256xf32>
    %217 = vector.broadcast %198 : vector<4x1xf32> to vector<4x256xf32>
    %218 = arith.addf %216, %217 : vector<4x256xf32>
    %219 = arith.addf %218, %1 : vector<4x256xf32>
    %220 = vector.shape_cast %219 : vector<4x256xf32> to vector<1x4x256xf32>
    %c0_77 = arith.constant 0 : index
    %c0_78 = arith.constant 0 : index
    %c0_79 = arith.constant 0 : index
    %221 = vector.load %arg14[%c0_77, %c0_78, %c0_79] : memref<1x4x256xf32, #tpu.memory_space<vmem>>, vector<1x4x256xf32>
    tpu.vector_store %arg14[%c0_77, %c0_78, %c0_79], %220 {strides = array<i32>} : memref<1x4x256xf32, #tpu.memory_space<vmem>>, vector<1x4x256xf32>,
    return
  }
  func.func @transform_0(%arg0: i32) -> (i32, i32, i32) {
    %c0_i32 = arith.constant 0 : i32
    %c0_i32_0 = arith.constant 0 : i32
    %c0_i32_1 = arith.constant 0 : i32
    return %arg0, %c0_i32, %c0_i32_0 : i32, i32, i32
  }
  func.func @transform_1(%arg0: i32) -> (i32, i32) {
    %c0_i32 = arith.constant 0 : i32
    %c0_i32_0 = arith.constant 0 : i32
    %c0_i32_1 = arith.constant 0 : i32
    return %c0_i32, %c0_i32_0 : i32, i32
  }
  func.func @transform_2(%arg0: i32) -> (i32, i32) {
    %c0_i32 = arith.constant 0 : i32
    %c0_i32_0 = arith.constant 0 : i32
    %c0_i32_1 = arith.constant 0 : i32
    return %c0_i32, %c0_i32_0 : i32, i32
  }
  func.func @transform_3(%arg0: i32) -> (i32, i32) {
    %c0_i32 = arith.constant 0 : i32
    %c0_i32_0 = arith.constant 0 : i32
    %c0_i32_1 = arith.constant 0 : i32
    return %c0_i32, %c0_i32_0 : i32, i32
  }
  func.func @transform_4(%arg0: i32) -> (i32, i32) {
    %c0_i32 = arith.constant 0 : i32
    %c0_i32_0 = arith.constant 0 : i32
    %c0_i32_1 = arith.constant 0 : i32
    return %c0_i32, %c0_i32_0 : i32, i32
  }
  func.func @transform_5(%arg0: i32) -> (i32, i32) {
    %c0_i32 = arith.constant 0 : i32
    %c0_i32_0 = arith.constant 0 : i32
    %c0_i32_1 = arith.constant 0 : i32
    return %c0_i32, %c0_i32_0 : i32, i32
  }
  func.func @transform_6(%arg0: i32) -> (i32, i32) {
    %c0_i32 = arith.constant 0 : i32
    %c0_i32_0 = arith.constant 0 : i32
    %c0_i32_1 = arith.constant 0 : i32
    return %c0_i32, %c0_i32_0 : i32, i32
  }
  func.func @transform_7(%arg0: i32) -> (i32, i32) {
    %c0_i32 = arith.constant 0 : i32
    %c0_i32_0 = arith.constant 0 : i32
    %c0_i32_1 = arith.constant 0 : i32
    return %c0_i32, %c0_i32_0 : i32, i32
  }
  func.func @transform_8(%arg0: i32) -> (i32, i32) {
    %c0_i32 = arith.constant 0 : i32
    %c0_i32_0 = arith.constant 0 : i32
    %c0_i32_1 = arith.constant 0 : i32
    return %c0_i32, %c0_i32_0 : i32, i32
  }
  func.func @transform_9(%arg0: i32) -> (i32, i32) {
    %c0_i32 = arith.constant 0 : i32
    %c0_i32_0 = arith.constant 0 : i32
    %c0_i32_1 = arith.constant 0 : i32
    return %c0_i32, %c0_i32_0 : i32, i32
  }
  func.func @transform_10(%arg0: i32) -> (i32, i32) {
    %c0_i32 = arith.constant 0 : i32
    %c0_i32_0 = arith.constant 0 : i32
    %c0_i32_1 = arith.constant 0 : i32
    return %c0_i32, %c0_i32_0 : i32, i32
  }
  func.func @transform_11(%arg0: i32) -> (i32, i32) {
    %c0_i32 = arith.constant 0 : i32
    %c0_i32_0 = arith.constant 0 : i32
    %c0_i32_1 = arith.constant 0 : i32
    return %c0_i32, %c0_i32_0 : i32, i32
  }
  func.func @transform_12(%arg0: i32) -> (i32, i32) {
    %c0_i32 = arith.constant 0 : i32
    %c0_i32_0 = arith.constant 0 : i32
    %c0_i32_1 = arith.constant 0 : i32
    return %c0_i32, %c0_i32_0 : i32, i32
  }
  func.func @transform_13(%arg0: i32) -> (i32, i32, i32) {
    %c0_i32 = arith.constant 0 : i32
    %c0_i32_0 = arith.constant 0 : i32
    %c0_i32_1 = arith.constant 0 : i32
    return %arg0, %c0_i32, %c0_i32_0 : i32, i32, i32
  }
}

</mosaic_0001>

<llo_original>
// kernel: tpu_custom_call.1
$region0: #{tpu_custom_call.1}
  #allocation0 [shape = 'u32[]', space=smem, size = 0x4, offset = 0x4, fixed_abs, tag = 'smem constant byte address 0x4 - core index']
  #allocation1 [shape = 'u32[144,128]{1,0:T(1,128)}', space=vmem, size = 0x12000, scoped, tag = 'internal scratch']
  #allocation2 [shape = 'f32[8,18,18]{2,1,0:T(8,128)}', space=vmem, size = 0x18000, scoped, tag = 'scratch operand']
  %s0 = inlined_call_operand.vmem [shape: f32[2,4,256], index: 0, kind: input, shape index: {}]
  %s1 = inlined_call_operand.vmem [shape: f32[8,4], index: 1, kind: input, shape index: {}]
  %s2 = inlined_call_operand.vmem [shape: f32[8,1], index: 2, kind: input, shape index: {}]
  %s3 = inlined_call_operand.vmem [shape: f32[8,1], index: 3, kind: input, shape index: {}]
  %s4 = inlined_call_operand.vmem [shape: f32[8,1], index: 4, kind: input, shape index: {}]
  %s5 = inlined_call_operand.vmem [shape: f32[8,9], index: 5, kind: input, shape index: {}]
  %s6 = inlined_call_operand.vmem [shape: f32[8,1], index: 6, kind: input, shape index: {}]
  %s7 = inlined_call_operand.vmem [shape: f32[8,1], index: 7, kind: input, shape index: {}]
  %s8 = inlined_call_operand.vmem [shape: f32[8,1], index: 8, kind: input, shape index: {}]
  %s9 = inlined_call_operand.vmem [shape: f32[4,8], index: 9, kind: input, shape index: {}]
  %s10 = inlined_call_operand.vmem [shape: f32[4,1], index: 10, kind: input, shape index: {}]
  %s11 = inlined_call_operand.vmem [shape: f32[4,1], index: 11, kind: input, shape index: {}]
  %s12 = inlined_call_operand.vmem [shape: f32[4,1], index: 12, kind: input, shape index: {}]
  %s13 = inlined_call_operand.hbm [shape: f32[2,4,256], index: 13, kind: output, shape index: {}]
  %s14 = sld [smem:[#allocation0]]
  $region85: #{tpu_custom_call.1} parent=0
    _
  %s16 = ssub.s32 1, %s14
  %s17 = scalar_select 0, %s16, %s14
  $region1: #{tpu_custom_call.1} parent=0
    #allocation3 [shape = 'u8[8192]{0}', space=vmem, size = 0x2000, scoped, tag = 'output window, operand 0']
    #allocation4 [shape = 's32[2]{0}', space=sflag, size = 0x8, scoped, tag = 'scoped memory for tpu_custom_call.1']
    %18 = vsyncpa [#allocation4], 0
    %s19 = scalar_lea.sflag [#allocation4], 1
    %20 = vsyncpa %s19, 0
    loop: start=0, step=1, limit=4
    $region2: #{tpu_custom_call.1} parent=1 // loop_pre_header
      _
    $region3: #{tpu_custom_call.1} parent=1 // loop_header
      %s22 = sphi 0, %s26
      %p23 = scmp.ge.s32.totalorder %s22, 4
      %s32 = sphi 0, %s34
      %s35 = sphi 0, %s32
      %s36 = sphi 0, %s35
      %s52 = sphi 0, %s36
      %s56 = sphi 0, %s56
      %s58 = sphi 0, %s56
      %s59 = sphi 0, %s58
      %s73 = sphi 0, %s59
      %s77 = sphi 0, %s77
      %s79 = sphi 0, %s77
      %s80 = sphi 0, %s79
      %s94 = sphi 0, %s80
      %s98 = sphi 0, %s98
      %s100 = sphi 0, %s98
      %s101 = sphi 0, %s100
      %s115 = sphi 0, %s101
      %s119 = sphi 0, %s119
      %s121 = sphi 0, %s119
      %s122 = sphi 0, %s121
      %s136 = sphi 0, %s122
      %s140 = sphi 0, %s140
      %s142 = sphi 0, %s140
      %s143 = sphi 0, %s142
      %s157 = sphi 0, %s143
      %s161 = sphi 0, %s161
      %s163 = sphi 0, %s161
      %s164 = sphi 0, %s163
      %s178 = sphi 0, %s164
      %s182 = sphi 0, %s182
      %s184 = sphi 0, %s182
      %s185 = sphi 0, %s184
      %s199 = sphi 0, %s185
      %s203 = sphi 0, %s203
      %s205 = sphi 0, %s203
      %s206 = sphi 0, %s205
      %s220 = sphi 0, %s206
      %s224 = sphi 0, %s224
      %s226 = sphi 0, %s224
      %s227 = sphi 0, %s226
      %s241 = sphi 0, %s227
      %s245 = sphi 0, %s245
      %s247 = sphi 0, %s245
      %s248 = sphi 0, %s247
      %s262 = sphi 0, %s248
      %s266 = sphi 0, %s266
      %s268 = sphi 0, %s266
      %s269 = sphi 0, %s268
      %s283 = sphi 0, %s269
      %s287 = sphi 0, %s287
      %s289 = sphi 0, %s287
      %s290 = sphi 0, %s289
      %s304 = sphi 0, %s290
      %s310 = sphi 0, %s312
      %s313 = sphi 0, %s310
      %s314 = sphi 0, %s313
      %s330 = sphi 0, %s314
    $region4: #{tpu_custom_call.1} parent=1 // loop_header_branch
      %25 = sbr.rel (%p23) target = $region8
    $region5: #{tpu_custom_call.1} parent=1 // loop_body
      %s27 = ssub.s32 %s22, 1
      %s28 = ssub.s32 %s22, 2
      %s29 = sadd.s32 %s22, 1
      %s30 = ssub.s32 %s22, %s29
      %p31 = scmp.eq.s32.totalorder %s30, 0
      %s33 = sadd.s32 %s32, 1
      %s34 = scalar_select %p31, %s32, %s33
      %p37 = pneg %p31
      %p38 = scmp.eq.s32.totalorder %s22, 1
      %p39 = por %p37, %p38
      %p40 = scmp.ne.s32.totalorder %s32, %s35
      %p41 = scmp.eq.s32.totalorder %s22, 0
      %p42 = por %p40, %p41
      %p43 = scmp.ne.s32.totalorder %s32, %s35
      %p44 = scmp.eq.s32.totalorder %s27, 1
      %p45 = por %p43, %p44
      %p46 = scmp.ne.s32.totalorder %s35, %s36
      %p47 = scmp.eq.s32.totalorder %s27, 0
      %p48 = por %p46, %p47
      %p49 = scmp.ne.s32.totalorder %s35, %s36
      %p50 = scmp.eq.s32.totalorder %s28, 1
      %p51 = por %p49, %p50
      %p53 = scmp.ne.s32.totalorder %s36, %s52
      %p54 = scmp.eq.s32.totalorder %s28, 0
      %p55 = por %p53, %p54
      %s57 = sadd.s32 %s56, 1
      %p60 = scmp.eq.s32.totalorder %s22, 1
      %p61 = scmp.ne.s32.totalorder %s56, %s58
      %p62 = scmp.eq.s32.totalorder %s22, 0
      %p63 = por %p61, %p62
      %p64 = scmp.ne.s32.totalorder %s56, %s58
      %p65 = scmp.eq.s32.totalorder %s27, 1
      %p66 = por %p64, %p65
      %p67 = scmp.ne.s32.totalorder %s58, %s59
      %p68 = scmp.eq.s32.totalorder %s27, 0
      %p69 = por %p67, %p68
      %p70 = scmp.ne.s32.totalorder %s58, %s59
      %p71 = scmp.eq.s32.totalorder %s28, 1
      %p72 = por %p70, %p71
      %p74 = scmp.ne.s32.totalorder %s59, %s73
      %p75 = scmp.eq.s32.totalorder %s28, 0
      %p76 = por %p74, %p75
      %s78 = sadd.s32 %s77, 1
      %p81 = scmp.eq.s32.totalorder %s22, 1
      %p82 = scmp.ne.s32.totalorder %s77, %s79
      %p83 = scmp.eq.s32.totalorder %s22, 0
      %p84 = por %p82, %p83
      %p85 = scmp.ne.s32.totalorder %s77, %s79
      %p86 = scmp.eq.s32.totalorder %s27, 1
      %p87 = por %p85, %p86
      %p88 = scmp.ne.s32.totalorder %s79, %s80
      %p89 = scmp.eq.s32.totalorder %s27, 0
      %p90 = por %p88, %p89
      %p91 = scmp.ne.s32.totalorder %s79, %s80
      %p92 = scmp.eq.s32.totalorder %s28, 1
      %p93 = por %p91, %p92
      %p95 = scmp.ne.s32.totalorder %s80, %s94
      %p96 = scmp.eq.s32.totalorder %s28, 0
      %p97 = por %p95, %p96
      %s99 = sadd.s32 %s98, 1
      %p102 = scmp.eq.s32.totalorder %s22, 1
      %p103 = scmp.ne.s32.totalorder %s98, %s100
      %p104 = scmp.eq.s32.totalorder %s22, 0
      %p105 = por %p103, %p104
      %p106 = scmp.ne.s32.totalorder %s98, %s100
      %p107 = scmp.eq.s32.totalorder %s27, 1
      %p108 = por %p106, %p107
      %p109 = scmp.ne.s32.totalorder %s100, %s101
      %p110 = scmp.eq.s32.totalorder %s27, 0
      %p111 = por %p109, %p110
      %p112 = scmp.ne.s32.totalorder %s100, %s101
      %p113 = scmp.eq.s32.totalorder %s28, 1
      %p114 = por %p112, %p113
      %p116 = scmp.ne.s32.totalorder %s101, %s115
      %p117 = scmp.eq.s32.totalorder %s28, 0
      %p118 = por %p116, %p117
      %s120 = sadd.s32 %s119, 1
      %p123 = scmp.eq.s32.totalorder %s22, 1
      %p124 = scmp.ne.s32.totalorder %s119, %s121
      %p125 = scmp.eq.s32.totalorder %s22, 0
      %p126 = por %p124, %p125
      %p127 = scmp.ne.s32.totalorder %s119, %s121
      %p128 = scmp.eq.s32.totalorder %s27, 1
      %p129 = por %p127, %p128
      %p130 = scmp.ne.s32.totalorder %s121, %s122
      %p131 = scmp.eq.s32.totalorder %s27, 0
      %p132 = por %p130, %p131
      %p133 = scmp.ne.s32.totalorder %s121, %s122
      %p134 = scmp.eq.s32.totalorder %s28, 1
      %p135 = por %p133, %p134
      %p137 = scmp.ne.s32.totalorder %s122, %s136
      %p138 = scmp.eq.s32.totalorder %s28, 0
      %p139 = por %p137, %p138
      %s141 = sadd.s32 %s140, 1
      %p144 = scmp.eq.s32.totalorder %s22, 1
      %p145 = scmp.ne.s32.totalorder %s140, %s142
      %p146 = scmp.eq.s32.totalorder %s22, 0
      %p147 = por %p145, %p146
      %p148 = scmp.ne.s32.totalorder %s140, %s142
      %p149 = scmp.eq.s32.totalorder %s27, 1
      %p150 = por %p148, %p149
      %p151 = scmp.ne.s32.totalorder %s142, %s143
      %p152 = scmp.eq.s32.totalorder %s27, 0
      %p153 = por %p151, %p152
      %p154 = scmp.ne.s32.totalorder %s142, %s143
      %p155 = scmp.eq.s32.totalorder %s28, 1
      %p156 = por %p154, %p155
      %p158 = scmp.ne.s32.totalorder %s143, %s157
      %p159 = scmp.eq.s32.totalorder %s28, 0
      %p160 = por %p158, %p159
      %s162 = sadd.s32 %s161, 1
      %p165 = scmp.eq.s32.totalorder %s22, 1
      %p166 = scmp.ne.s32.totalorder %s161, %s163
      %p167 = scmp.eq.s32.totalorder %s22, 0
      %p168 = por %p166, %p167
      %p169 = scmp.ne.s32.totalorder %s161, %s163
      %p170 = scmp.eq.s32.totalorder %s27, 1
      %p171 = por %p169, %p170
      %p172 = scmp.ne.s32.totalorder %s163, %s164
      %p173 = scmp.eq.s32.totalorder %s27, 0
      %p174 = por %p172, %p173
      %p175 = scmp.ne.s32.totalorder %s163, %s164
      %p176 = scmp.eq.s32.totalorder %s28, 1
      %p177 = por %p175, %p176
      %p179 = scmp.ne.s32.totalorder %s164, %s178
      %p180 = scmp.eq.s32.totalorder %s28, 0
      %p181 = por %p179, %p180
      %s183 = sadd.s32 %s182, 1
      %p186 = scmp.eq.s32.totalorder %s22, 1
      %p187 = scmp.ne.s32.totalorder %s182, %s184
      %p188 = scmp.eq.s32.totalorder %s22, 0
      %p189 = por %p187, %p188
      %p190 = scmp.ne.s32.totalorder %s182, %s184
      %p191 = scmp.eq.s32.totalorder %s27, 1
      %p192 = por %p190, %p191
      %p193 = scmp.ne.s32.totalorder %s184, %s185
      %p194 = scmp.eq.s32.totalorder %s27, 0
      %p195 = por %p193, %p194
      %p196 = scmp.ne.s32.totalorder %s184, %s185
      %p197 = scmp.eq.s32.totalorder %s28, 1
      %p198 = por %p196, %p197
      %p200 = scmp.ne.s32.totalorder %s185, %s199
      %p201 = scmp.eq.s32.totalorder %s28, 0
      %p202 = por %p200, %p201
      %s204 = sadd.s32 %s203, 1
      %p207 = scmp.eq.s32.totalorder %s22, 1
      %p208 = scmp.ne.s32.totalorder %s203, %s205
      %p209 = scmp.eq.s32.totalorder %s22, 0
      %p210 = por %p208, %p209
      %p211 = scmp.ne.s32.totalorder %s203, %s205
      %p212 = scmp.eq.s32.totalorder %s27, 1
      %p213 = por %p211, %p212
      %p214 = scmp.ne.s32.totalorder %s205, %s206
      %p215 = scmp.eq.s32.totalorder %s27, 0
      %p216 = por %p214, %p215
      %p217 = scmp.ne.s32.totalorder %s205, %s206
      %p218 = scmp.eq.s32.totalorder %s28, 1
      %p219 = por %p217, %p218
      %p221 = scmp.ne.s32.totalorder %s206, %s220
      %p222 = scmp.eq.s32.totalorder %s28, 0
      %p223 = por %p221, %p222
      %s225 = sadd.s32 %s224, 1
      %p228 = scmp.eq.s32.totalorder %s22, 1
      %p229 = scmp.ne.s32.totalorder %s224, %s226
      %p230 = scmp.eq.s32.totalorder %s22, 0
      %p231 = por %p229, %p230
      %p232 = scmp.ne.s32.totalorder %s224, %s226
      %p233 = scmp.eq.s32.totalorder %s27, 1
      %p234 = por %p232, %p233
      %p235 = scmp.ne.s32.totalorder %s226, %s227
      %p236 = scmp.eq.s32.totalorder %s27, 0
      %p237 = por %p235, %p236
      %p238 = scmp.ne.s32.totalorder %s226, %s227
      %p239 = scmp.eq.s32.totalorder %s28, 1
      %p240 = por %p238, %p239
      %p242 = scmp.ne.s32.totalorder %s227, %s241
      %p243 = scmp.eq.s32.totalorder %s28, 0
      %p244 = por %p242, %p243
      %s246 = sadd.s32 %s245, 1
      %p249 = scmp.eq.s32.totalorder %s22, 1
      %p250 = scmp.ne.s32.totalorder %s245, %s247
      %p251 = scmp.eq.s32.totalorder %s22, 0
      %p252 = por %p250, %p251
      %p253 = scmp.ne.s32.totalorder %s245, %s247
      %p254 = scmp.eq.s32.totalorder %s27, 1
      %p255 = por %p253, %p254
      %p256 = scmp.ne.s32.totalorder %s247, %s248
      %p257 = scmp.eq.s32.totalorder %s27, 0
      %p258 = por %p256, %p257
      %p259 = scmp.ne.s32.totalorder %s247, %s248
      %p260 = scmp.eq.s32.totalorder %s28, 1
      %p261 = por %p259, %p260
      %p263 = scmp.ne.s32.totalorder %s248, %s262
      %p264 = scmp.eq.s32.totalorder %s28, 0
      %p265 = por %p263, %p264
      %s267 = sadd.s32 %s266, 1
      %p270 = scmp.eq.s32.totalorder %s22, 1
      %p271 = scmp.ne.s32.totalorder %s266, %s268
      %p272 = scmp.eq.s32.totalorder %s22, 0
      %p273 = por %p271, %p272
      %p274 = scmp.ne.s32.totalorder %s266, %s268
      %p275 = scmp.eq.s32.totalorder %s27, 1
      %p276 = por %p274, %p275
      %p277 = scmp.ne.s32.totalorder %s268, %s269
      %p278 = scmp.eq.s32.totalorder %s27, 0
      %p279 = por %p277, %p278
      %p280 = scmp.ne.s32.totalorder %s268, %s269
      %p281 = scmp.eq.s32.totalorder %s28, 1
      %p282 = por %p280, %p281
      %p284 = scmp.ne.s32.totalorder %s269, %s283
      %p285 = scmp.eq.s32.totalorder %s28, 0
      %p286 = por %p284, %p285
      %s288 = sadd.s32 %s287, 1
      %p291 = scmp.eq.s32.totalorder %s22, 1
      %p292 = scmp.ne.s32.totalorder %s287, %s289
      %p293 = scmp.eq.s32.totalorder %s22, 0
      %p294 = por %p292, %p293
      %p295 = scmp.ne.s32.totalorder %s287, %s289
      %p296 = scmp.eq.s32.totalorder %s27, 1
      %p297 = por %p295, %p296
      %p298 = scmp.ne.s32.totalorder %s289, %s290
      %p299 = scmp.eq.s32.totalorder %s27, 0
      %p300 = por %p298, %p299
      %p301 = scmp.ne.s32.totalorder %s289, %s290
      %p302 = scmp.eq.s32.totalorder %s28, 1
      %p303 = por %p301, %p302
      %p305 = scmp.ne.s32.totalorder %s290, %s304
      %p306 = scmp.eq.s32.totalorder %s28, 0
      %p307 = por %p305, %p306
      %s308 = ssub.s32 %s22, %s29
      %p309 = scmp.eq.s32.totalorder %s308, 0
      %s311 = sadd.s32 %s310, 1
      %s312 = scalar_select %p309, %s310, %s311
      %p315 = pneg %p309
      %p316 = scmp.eq.s32.totalorder %s22, 1
      %p317 = por %p315, %p316
      %p318 = scmp.ne.s32.totalorder %s310, %s313
      %p319 = scmp.eq.s32.totalorder %s22, 0
      %p320 = por %p318, %p319
      %p321 = scmp.ne.s32.totalorder %s310, %s313
      %p322 = scmp.eq.s32.totalorder %s27, 1
      %p323 = por %p321, %p322
      %p324 = scmp.ne.s32.totalorder %s313, %s314
      %p325 = scmp.eq.s32.totalorder %s27, 0
      %p326 = por %p324, %p325
      %p327 = scmp.ne.s32.totalorder %s313, %s314
      %p328 = scmp.eq.s32.totalorder %s28, 1
      %p329 = por %p327, %p328
      %p331 = scmp.ne.s32.totalorder %s314, %s330
      %p332 = scmp.eq.s32.totalorder %s28, 0
      %p333 = por %p331, %p332
      %p334 = scmp.le.s32.totalorder 1, %s22
      %p335 = scmp.lt.s32.totalorder %s22, 3
      %p336 = pnand %p334, %p335
      %p337 = pneg %p336
      // Predicated region
      $region9: #{tpu_custom_call.1} parent=5 // pred_check
        _
      $region10: #{tpu_custom_call.1} parent=5 // pred_check_branch
        %339 = sbr.rel (%p336) target = $region12
      $region11: #{tpu_custom_call.1} parent=5 // pred_region
        %s340 = ssub.s32 %s22, 1
        // Predicated region
        $region13: #{tpu_custom_call.1} parent=11 // pred_check
          %p341 = pneg %p69
        $region14: #{tpu_custom_call.1} parent=11 // pred_check_branch
          %343 = sbr.rel (%p341) target = $region16
        $region15: #{tpu_custom_call.1} parent=11 // pred_region
          _
        $region16: #{tpu_custom_call.1} parent=11 // pred_fallthru
          _
        // Predicated region
        $region17: #{tpu_custom_call.1} parent=11 // pred_check
          %p344 = pneg %p90
        $region18: #{tpu_custom_call.1} parent=11 // pred_check_branch
          %346 = sbr.rel (%p344) target = $region20
        $region19: #{tpu_custom_call.1} parent=11 // pred_region
          _
        $region20: #{tpu_custom_call.1} parent=11 // pred_fallthru
          _
        // Predicated region
        $region21: #{tpu_custom_call.1} parent=11 // pred_check
          %p347 = pneg %p111
        $region22: #{tpu_custom_call.1} parent=11 // pred_check_branch
          %349 = sbr.rel (%p347) target = $region24
        $region23: #{tpu_custom_call.1} parent=11 // pred_region
          _
        $region24: #{tpu_custom_call.1} parent=11 // pred_fallthru
          _
        // Predicated region
        $region25: #{tpu_custom_call.1} parent=11 // pred_check
          %p350 = pneg %p132
        $region26: #{tpu_custom_call.1} parent=11 // pred_check_branch
          %352 = sbr.rel (%p350) target = $region28
        $region27: #{tpu_custom_call.1} parent=11 // pred_region
          _
        $region28: #{tpu_custom_call.1} parent=11 // pred_fallthru
          _
        // Predicated region
        $region29: #{tpu_custom_call.1} parent=11 // pred_check
          %p353 = pneg %p153
        $region30: #{tpu_custom_call.1} parent=11 // pred_check_branch
          %355 = sbr.rel (%p353) target = $region32
        $region31: #{tpu_custom_call.1} parent=11 // pred_region
          _
        $region32: #{tpu_custom_call.1} parent=11 // pred_fallthru
          _
        // Predicated region
        $region33: #{tpu_custom_call.1} parent=11 // pred_check
          %p356 = pneg %p174
        $region34: #{tpu_custom_call.1} parent=11 // pred_check_branch
          %358 = sbr.rel (%p356) target = $region36
        $region35: #{tpu_custom_call.1} parent=11 // pred_region
          _
        $region36: #{tpu_custom_call.1} parent=11 // pred_fallthru
          _
        // Predicated region
        $region37: #{tpu_custom_call.1} parent=11 // pred_check
          %p359 = pneg %p195
        $region38: #{tpu_custom_call.1} parent=11 // pred_check_branch
          %361 = sbr.rel (%p359) target = $region40
        $region39: #{tpu_custom_call.1} parent=11 // pred_region
          _
        $region40: #{tpu_custom_call.1} parent=11 // pred_fallthru
          _
        // Predicated region
        $region41: #{tpu_custom_call.1} parent=11 // pred_check
          %p362 = pneg %p216
        $region42: #{tpu_custom_call.1} parent=11 // pred_check_branch
          %364 = sbr.rel (%p362) target = $region44
        $region43: #{tpu_custom_call.1} parent=11 // pred_region
          _
        $region44: #{tpu_custom_call.1} parent=11 // pred_fallthru
          _
        // Predicated region
        $region45: #{tpu_custom_call.1} parent=11 // pred_check
          %p365 = pneg %p237
        $region46: #{tpu_custom_call.1} parent=11 // pred_check_branch
          %367 = sbr.rel (%p365) target = $region48
        $region47: #{tpu_custom_call.1} parent=11 // pred_region
          _
        $region48: #{tpu_custom_call.1} parent=11 // pred_fallthru
          _
        // Predicated region
        $region49: #{tpu_custom_call.1} parent=11 // pred_check
          %p368 = pneg %p258
        $region50: #{tpu_custom_call.1} parent=11 // pred_check_branch
          %370 = sbr.rel (%p368) target = $region52
        $region51: #{tpu_custom_call.1} parent=11 // pred_region
          _
        $region52: #{tpu_custom_call.1} parent=11 // pred_fallthru
          _
        // Predicated region
        $region53: #{tpu_custom_call.1} parent=11 // pred_check
          %p371 = pneg %p279
        $region54: #{tpu_custom_call.1} parent=11 // pred_check_branch
          %373 = sbr.rel (%p371) target = $region56
        $region55: #{tpu_custom_call.1} parent=11 // pred_region
          _
        $region56: #{tpu_custom_call.1} parent=11 // pred_fallthru
          _
        // Predicated region
        $region57: #{tpu_custom_call.1} parent=11 // pred_check
          %p374 = pneg %p300
        $region58: #{tpu_custom_call.1} parent=11 // pred_check_branch
          %376 = sbr.rel (%p374) target = $region60
        $region59: #{tpu_custom_call.1} parent=11 // pred_region
          _
        $region60: #{tpu_custom_call.1} parent=11 // pred_fallthru
          _
      $region12: #{tpu_custom_call.1} parent=5 // pred_fallthru
        _
      %p377 = scmp.lt.s32.totalorder %s22, 2
      // Predicated region
      $region61: #{tpu_custom_call.1} parent=5 // pred_check
        %p378 = pneg %p377
      $region62: #{tpu_custom_call.1} parent=5 // pred_check_branch
        %380 = sbr.rel (%p378) target = $region64
      $region63: #{tpu_custom_call.1} parent=5 // pred_region
        // Predicated region
        $region65: #{tpu_custom_call.1} parent=63 // pred_check
          %p381 = pneg %p42
        $region66: #{tpu_custom_call.1} parent=63 // pred_check_branch
          %383 = sbr.rel (%p381) target = $region68
        $region67: #{tpu_custom_call.1} parent=63 // pred_region
          %p384 = scmp.lt.s32.totalorder %s22, 1
          %s385 = scalar_select %p384, %s22, 1
          %s386 = smul.addr %s385, 2
          %s387 = smul.addr %s386, 4
          %s388 = scalar_lea.vmem %s0, %s387
        $region68: #{tpu_custom_call.1} parent=63 // pred_fallthru
          _
      $region64: #{tpu_custom_call.1} parent=5 // pred_fallthru
        _
      %p389 = scmp.le.s32.totalorder 1, %s22
      %p390 = scmp.lt.s32.totalorder %s22, 3
      %p391 = pnand %p389, %p390
      %p392 = pneg %p391
      // Predicated region
      $region69: #{tpu_custom_call.1} parent=5 // pred_check
        _
      $region70: #{tpu_custom_call.1} parent=5 // pred_check_branch
        %394 = sbr.rel (%p391) target = $region72
      $region71: #{tpu_custom_call.1} parent=5 // pred_region
        %s395 = ssub.s32 %s22, 1
        %p396 = scmp.lt.s32.totalorder %s27, 1
        %s397 = scalar_select %p396, %s27, 1
        %s398 = smul.addr %s397, 2
        %s399 = smul.addr %s398, 4
        %s400 = scalar_lea.vmem %s0, %s399
        %p401 = pneg %p48
        %p402 = pneg %p45
        %p403 = pneg %p69
        %p404 = pneg %p66
        %p405 = pneg %p90
        %p406 = pneg %p87
        %p407 = pneg %p111
        %p408 = pneg %p108
        %p409 = pneg %p132
        %p410 = pneg %p129
        %p411 = pneg %p153
        %p412 = pneg %p150
        %p413 = pneg %p174
        %p414 = pneg %p171
        %p415 = pneg %p195
        %p416 = pneg %p192
        %p417 = pneg %p216
        %p418 = pneg %p213
        %p419 = pneg %p237
        %p420 = pneg %p234
        %p421 = pneg %p258
        %p422 = pneg %p255
        %p423 = pneg %p279
        %p424 = pneg %p276
        %p425 = pneg %p300
        %p426 = pneg %p297
        %p427 = pneg %p326
        %p428 = pneg %p323
        %s429 = sand.u32 %s313, 1
        %s430 = scalar_lea.sflag [#allocation4], %s429
        %s431 = sand.u32 %s313, 1
        %s432 = smul.addr %s431, 8
        %s433 = scalar_lea.vmem [#allocation3], %s432
        %p434 = scmp.lt.s32.totalorder %s27, 1
        %s435 = scalar_select %p434, %s27, 1
        %s436 = smul.addr %s435, 2
        %s437 = smul.addr %s436, 4
        %s438 = scalar_lea.vmem %s0, %s437
        %v439 = vld [vmem:[%s438] sm:$0xff]
        %v440 = vld [vmem:[%s1] sm:$0xff]
        %v441 = vld [vmem:[%s2] sm:$0xff]
        %443 = vset.pattern.permute.xlu0 0
        %444 = vperm.xlu0 %443, %v440
        %v445 = vpop.permute.xlu0 %444
        %v448 = vlaneseq
        %v449 = vshrl.u32 %v448, 7
        %v450 = vsub.s32 0, %v449
        %v451 = vrot.slane %v439, %v450
        %v452 = vlaneseq
        %v453 = vshrl.u32 %v452, 7
        %v454 = vsub.s32 4, %v453
        %v455 = vrot.slane %v439, %v454
        %v458 = vlaneseq
        %v459 = vshrl.u32 %v458, 7
        %v460 = vsub.s32 0, %v459
        %v461 = vrot.slane %v451, %v460
        %v462 = vlaneseq
        %v463 = vshrl.u32 %v462, 7
        %v464 = vsub.s32 0, %v463
        %v465 = vrot.slane %v455, %v464
        %v466 = vmul.f32 %v445, %v461
        %v467 = vmul.f32 %v445, %v465
        %468 = vset.pattern.permute.xlu0 1
        %469 = vperm.xlu0 %468, %v440
        %v470 = vpop.permute.xlu0 %469
        %v472 = vlaneseq
        %v473 = vshrl.u32 %v472, 7
        %v474 = vsub.s32 1, %v473
        %v475 = vrot.slane %v439, %v474
        %v476 = vlaneseq
        %v477 = vshrl.u32 %v476, 7
        %v478 = vsub.s32 5, %v477
        %v479 = vrot.slane %v439, %v478
        %v482 = vlaneseq
        %v483 = vshrl.u32 %v482, 7
        %v484 = vsub.s32 1, %v483
        %v485 = vrot.slane %v475, %v484
        %v486 = vlaneseq
        %v487 = vshrl.u32 %v486, 7
        %v488 = vsub.s32 1, %v487
        %v489 = vrot.slane %v479, %v488
        %v490 = vmul.f32 %v470, %v485
        %v491 = vmul.f32 %v470, %v489
        %v492 = vadd.f32 %v466, %v490
        %v493 = vadd.f32 %v467, %v491
        %494 = vset.pattern.permute.xlu0 2
        %495 = vperm.xlu0 %494, %v440
        %v496 = vpop.permute.xlu0 %495
        %v498 = vlaneseq
        %v499 = vshrl.u32 %v498, 7
        %v500 = vsub.s32 2, %v499
        %v501 = vrot.slane %v439, %v500
        %v502 = vlaneseq
        %v503 = vshrl.u32 %v502, 7
        %v504 = vsub.s32 6, %v503
        %v505 = vrot.slane %v439, %v504
        %v508 = vlaneseq
        %v509 = vshrl.u32 %v508, 7
        %v510 = vsub.s32 2, %v509
        %v511 = vrot.slane %v501, %v510
        %v512 = vlaneseq
        %v513 = vshrl.u32 %v512, 7
        %v514 = vsub.s32 2, %v513
        %v515 = vrot.slane %v505, %v514
        %v516 = vmul.f32 %v496, %v511
        %v517 = vmul.f32 %v496, %v515
        %v518 = vadd.f32 %v492, %v516
        %v519 = vadd.f32 %v493, %v517
        %520 = vset.pattern.permute.xlu0 3
        %521 = vperm.xlu0 %520, %v440
        %v522 = vpop.permute.xlu0 %521
        %v524 = vlaneseq
        %v525 = vshrl.u32 %v524, 7
        %v526 = vsub.s32 3, %v525
        %v527 = vrot.slane %v439, %v526
        %v528 = vlaneseq
        %v529 = vshrl.u32 %v528, 7
        %v530 = vsub.s32 7, %v529
        %v531 = vrot.slane %v439, %v530
        %v534 = vlaneseq
        %v535 = vshrl.u32 %v534, 7
        %v536 = vsub.s32 3, %v535
        %v537 = vrot.slane %v527, %v536
        %v538 = vlaneseq
        %v539 = vshrl.u32 %v538, 7
        %v540 = vsub.s32 3, %v539
        %v541 = vrot.slane %v531, %v540
        %v542 = vmul.f32 %v522, %v537
        %v543 = vmul.f32 %v522, %v541
        %v544 = vadd.f32 %v518, %v542
        %v545 = vadd.f32 %v519, %v543
        %547 = vset.pattern.permute.xlu0 0
        %548 = vperm.xlu0 %547, %v441
        %v549 = vpop.permute.xlu0 %548
        %v551 = vadd.f32 %v544, %v549
        %v552 = vadd.f32 %v545, %v549
        %v553 = vld [vmem:[%s3] sm:$0xff]
        %v554 = vld [vmem:[%s4] sm:$0xff]
        %v555 = vadd.f32 %v551, %v552
        %556 = vadd.xlane.f32.xlu0 %v555
        %v557 = vpop.xlane.xlu0 %556
        %v558 = vrcp.pop 256.0
        %v559 = vmul.f32 %v557, %v558
        %v560 = vsub.f32 %v551, %v559
        %v561 = vsub.f32 %v552, %v559
        %v562 = vmul.f32 %v560, %v560
        %v563 = vmul.f32 %v561, %v561
        %v564 = vadd.f32 %v562, %v563
        %565 = vadd.xlane.f32.xlu0 %v564
        %v566 = vpop.xlane.xlu0 %565
        %v567 = vmul.f32 %v566, %v558
        %v568 = vadd.f32 %v567, 1e-05
        %v569 = vrsqrt.pop %v568
        %v570 = vmul.f32 %v560, %v569
        %v571 = vmul.f32 %v561, %v569
        %573 = vset.pattern.permute.xlu0 0
        %574 = vperm.xlu0 %573, %v553
        %v575 = vpop.permute.xlu0 %574
        %v577 = vmul.f32 %v570, %v575
        %v578 = vmul.f32 %v571, %v575
        %580 = vset.pattern.permute.xlu0 0
        %581 = vperm.xlu0 %580, %v554
        %v582 = vpop.permute.xlu0 %581
        %v584 = vadd.f32 %v577, %v582
        %v585 = vadd.f32 %v578, %v582
        %v586 = vmax.f32 %v584, 0.0
        %v587 = vmax.f32 %v585, 0.0
        %v588 = vmin.f32 %v586, 6.0
        %v589 = vmin.f32 %v587, 6.0
        %vm590 = vcmask 146432
        %591 = vst.msk [vmem:[#allocation2] sm:$0xff] %vm590, 0.0
        %592 = vst.msk [vmem:[#allocation2 + $0x8] sm:$0xff] %vm590, 0.0
        %vm593 = vcmask 140288
        %594 = vst.msk [vmem:[#allocation2 + $0x10] sm:$0x3] %vm593, 0.0
        %595 = vst.msk [vmem:[#allocation2 + $0x18] sm:$0xff] %vm590, 0.0
        %596 = vst.msk [vmem:[#allocation2 + $0x20] sm:$0xff] %vm590, 0.0
        %597 = vst.msk [vmem:[#allocation2 + $0x28] sm:$0x3] %vm593, 0.0
        %598 = vst.msk [vmem:[#allocation2 + $0x30] sm:$0xff] %vm590, 0.0
        %599 = vst.msk [vmem:[#allocation2 + $0x38] sm:$0xff] %vm590, 0.0
        %600 = vst.msk [vmem:[#allocation2 + $0x40] sm:$0x3] %vm593, 0.0
        %601 = vst.msk [vmem:[#allocation2 + $0x48] sm:$0xff] %vm590, 0.0
        %602 = vst.msk [vmem:[#allocation2 + $0x50] sm:$0xff] %vm590, 0.0
        %603 = vst.msk [vmem:[#allocation2 + $0x58] sm:$0x3] %vm593, 0.0
        %604 = vst.msk [vmem:[#allocation2 + $0x60] sm:$0xff] %vm590, 0.0
        %605 = vst.msk [vmem:[#allocation2 + $0x68] sm:$0xff] %vm590, 0.0
        %606 = vst.msk [vmem:[#allocation2 + $0x70] sm:$0x3] %vm593, 0.0
        %607 = vst.msk [vmem:[#allocation2 + $0x78] sm:$0xff] %vm590, 0.0
        %608 = vst.msk [vmem:[#allocation2 + $0x80] sm:$0xff] %vm590, 0.0
        %609 = vst.msk [vmem:[#allocation2 + $0x88] sm:$0x3] %vm593, 0.0
        %610 = vst.msk [vmem:[#allocation2 + $0x90] sm:$0xff] %vm590, 0.0
        %611 = vst.msk [vmem:[#allocation2 + $0x98] sm:$0xff] %vm590, 0.0
        %612 = vst.msk [vmem:[#allocation2 + $0xa0] sm:$0x3] %vm593, 0.0
        %613 = vst.msk [vmem:[#allocation2 + $0xa8] sm:$0xff] %vm590, 0.0
        %614 = vst.msk [vmem:[#allocation2 + $0xb0] sm:$0xff] %vm590, 0.0
        %615 = vst.msk [vmem:[#allocation2 + $0xb8] sm:$0x3] %vm593, 0.0
        %617 = vrot.lane.b32.xlu0 %v588, 112
        %v618 = vpop.permute.xlu0 %617
        %620 = vrot.lane.b32.xlu0 %v588, 96
        %v621 = vpop.permute.xlu0 %620
        %623 = vrot.lane.b32.xlu0 %v588, 80
        %v624 = vpop.permute.xlu0 %623
        %626 = vrot.lane.b32.xlu0 %v588, 64
        %v627 = vpop.permute.xlu0 %626
        %629 = vrot.lane.b32.xlu0 %v588, 48
        %v630 = vpop.permute.xlu0 %629
        %632 = vrot.lane.b32.xlu0 %v588, 32
        %v633 = vpop.permute.xlu0 %632
        %635 = vrot.lane.b32.xlu0 %v588, 16
        %v636 = vpop.permute.xlu0 %635
        %639 = vrot.lane.b32.xlu0 %v589, 112
        %v640 = vpop.permute.xlu0 %639
        %642 = vrot.lane.b32.xlu0 %v589, 96
        %v643 = vpop.permute.xlu0 %642
        %645 = vrot.lane.b32.xlu0 %v589, 80
        %v646 = vpop.permute.xlu0 %645
        %648 = vrot.lane.b32.xlu0 %v589, 64
        %v649 = vpop.permute.xlu0 %648
        %651 = vrot.lane.b32.xlu0 %v589, 48
        %v652 = vpop.permute.xlu0 %651
        %654 = vrot.lane.b32.xlu0 %v589, 32
        %v655 = vpop.permute.xlu0 %654
        %657 = vrot.lane.b32.xlu0 %v589, 16
        %v658 = vpop.permute.xlu0 %657
        %v660 = vcombine.low %v588, %v621
        %v661 = vcombine.high %v588, %v621
        %v663 = vunpack.c.l.s4 1983009808
        %v664 = vunpack.c.0.s8 %v663
        %v665 = vlaneseq
        %v666 = vshrl.u32 %v665, 7
        %v667 = vsub.s32 %v664, %v666
        %v668 = vrot.slane %v660, %v667
        %v670 = vunpack.c.l.s4 1983009808
        %v671 = vunpack.c.0.s8 %v670
        %v672 = vlaneseq
        %v673 = vshrl.u32 %v672, 7
        %v674 = vsub.s32 %v671, %v673
        %v675 = vrot.slane %v661, %v674
        %v676 = vcombine.low %v618, %v624
        %v677 = vcombine.high %v618, %v624
        %v679 = vunpack.c.l.s4 1983009808
        %v680 = vunpack.c.0.s8 %v679
        %v681 = vlaneseq
        %v682 = vshrl.u32 %v681, 7
        %v683 = vsub.s32 %v680, %v682
        %v684 = vrot.slane %v676, %v683
        %v686 = vunpack.c.l.s4 1983009808
        %v687 = vunpack.c.0.s8 %v686
        %v688 = vlaneseq
        %v689 = vshrl.u32 %v688, 7
        %v690 = vsub.s32 %v687, %v689
        %v691 = vrot.slane %v677, %v690
        %v692 = vcombine.low %v627, %v633
        %v693 = vcombine.high %v627, %v633
        %v695 = vunpack.c.l.s4 1983009808
        %v696 = vunpack.c.0.s8 %v695
        %v697 = vlaneseq
        %v698 = vshrl.u32 %v697, 7
        %v699 = vsub.s32 %v696, %v698
        %v700 = vrot.slane %v692, %v699
        %v702 = vunpack.c.l.s4 1983009808
        %v703 = vunpack.c.0.s8 %v702
        %v704 = vlaneseq
        %v705 = vshrl.u32 %v704, 7
        %v706 = vsub.s32 %v703, %v705
        %v707 = vrot.slane %v693, %v706
        %v708 = vcombine.low %v630, %v636
        %v709 = vcombine.high %v630, %v636
        %v711 = vunpack.c.l.s4 1983009808
        %v712 = vunpack.c.0.s8 %v711
        %v713 = vlaneseq
        %v714 = vshrl.u32 %v713, 7
        %v715 = vsub.s32 %v712, %v714
        %v716 = vrot.slane %v708, %v715
        %v718 = vunpack.c.l.s4 1983009808
        %v719 = vunpack.c.0.s8 %v718
        %v720 = vlaneseq
        %v721 = vshrl.u32 %v720, 7
        %v722 = vsub.s32 %v719, %v721
        %v723 = vrot.slane %v709, %v722
        %v724 = vcombine.low %v668, %v684
        %v725 = vcombine.high %v668, %v684
        %v727 = vunpack.c.l.s4 1934713408
        %v728 = vunpack.c.0.s8 %v727
        %v729 = vlaneseq
        %v730 = vshrl.u32 %v729, 7
        %v731 = vsub.s32 %v728, %v730
        %v732 = vrot.slane %v724, %v731
        %v734 = vunpack.c.l.s4 1934713408
        %v735 = vunpack.c.0.s8 %v734
        %v736 = vlaneseq
        %v737 = vshrl.u32 %v736, 7
        %v738 = vsub.s32 %v735, %v737
        %v739 = vrot.slane %v725, %v738
        %v740 = vcombine.low %v675, %v691
        %v741 = vcombine.high %v675, %v691
        %v743 = vunpack.c.l.s4 1934713408
        %v744 = vunpack.c.0.s8 %v743
        %v745 = vlaneseq
        %v746 = vshrl.u32 %v745, 7
        %v747 = vsub.s32 %v744, %v746
        %v748 = vrot.slane %v740, %v747
        %v750 = vunpack.c.l.s4 1934713408
        %v751 = vunpack.c.0.s8 %v750
        %v752 = vlaneseq
        %v753 = vshrl.u32 %v752, 7
        %v754 = vsub.s32 %v751, %v753
        %v755 = vrot.slane %v741, %v754
        %v756 = vcombine.low %v700, %v716
        %v757 = vcombine.high %v700, %v716
        %v759 = vunpack.c.l.s4 1934713408
        %v760 = vunpack.c.0.s8 %v759
        %v761 = vlaneseq
        %v762 = vshrl.u32 %v761, 7
        %v763 = vsub.s32 %v760, %v762
        %v764 = vrot.slane %v756, %v763
        %v766 = vunpack.c.l.s4 1934713408
        %v767 = vunpack.c.0.s8 %v766
        %v768 = vlaneseq
        %v769 = vshrl.u32 %v768, 7
        %v770 = vsub.s32 %v767, %v769
        %v771 = vrot.slane %v757, %v770
        %v772 = vcombine.low %v707, %v723
        %v773 = vcombine.high %v707, %v723
        %v775 = vunpack.c.l.s4 1934713408
        %v776 = vunpack.c.0.s8 %v775
        %v777 = vlaneseq
        %v778 = vshrl.u32 %v777, 7
        %v779 = vsub.s32 %v776, %v778
        %v780 = vrot.slane %v772, %v779
        %v782 = vunpack.c.l.s4 1934713408
        %v783 = vunpack.c.0.s8 %v782
        %v784 = vlaneseq
        %v785 = vshrl.u32 %v784, 7
        %v786 = vsub.s32 %v783, %v785
        %v787 = vrot.slane %v773, %v786
        %v788 = vcombine.low %v732, %v764
        %v789 = vcombine.high %v732, %v764
        %v790 = vcombine.low %v739, %v771
        %v791 = vcombine.high %v739, %v771
        %v792 = vcombine.low %v748, %v780
        %v793 = vcombine.high %v748, %v780
        %v794 = vcombine.low %v755, %v787
        %v795 = vcombine.high %v755, %v787
        %v796 = vcombine.low %v589, %v643
        %v797 = vcombine.high %v589, %v643
        %v799 = vunpack.c.l.s4 1983009808
        %v800 = vunpack.c.0.s8 %v799
        %v801 = vlaneseq
        %v802 = vshrl.u32 %v801, 7
        %v803 = vsub.s32 %v800, %v802
        %v804 = vrot.slane %v796, %v803
        %v806 = vunpack.c.l.s4 1983009808
        %v807 = vunpack.c.0.s8 %v806
        %v808 = vlaneseq
        %v809 = vshrl.u32 %v808, 7
        %v810 = vsub.s32 %v807, %v809
        %v811 = vrot.slane %v797, %v810
        %v812 = vcombine.low %v640, %v646
        %v813 = vcombine.high %v640, %v646
        %v815 = vunpack.c.l.s4 1983009808
        %v816 = vunpack.c.0.s8 %v815
        %v817 = vlaneseq
        %v818 = vshrl.u32 %v817, 7
        %v819 = vsub.s32 %v816, %v818
        %v820 = vrot.slane %v812, %v819
        %v822 = vunpack.c.l.s4 1983009808
        %v823 = vunpack.c.0.s8 %v822
        %v824 = vlaneseq
        %v825 = vshrl.u32 %v824, 7
        %v826 = vsub.s32 %v823, %v825
        %v827 = vrot.slane %v813, %v826
        %v828 = vcombine.low %v649, %v655
        %v829 = vcombine.high %v649, %v655
        %v831 = vunpack.c.l.s4 1983009808
        %v832 = vunpack.c.0.s8 %v831
        %v833 = vlaneseq
        %v834 = vshrl.u32 %v833, 7
        %v835 = vsub.s32 %v832, %v834
        %v836 = vrot.slane %v828, %v835
        %v838 = vunpack.c.l.s4 1983009808
        %v839 = vunpack.c.0.s8 %v838
        %v840 = vlaneseq
        %v841 = vshrl.u32 %v840, 7
        %v842 = vsub.s32 %v839, %v841
        %v843 = vrot.slane %v829, %v842
        %v844 = vcombine.low %v652, %v658
        %v845 = vcombine.high %v652, %v658
        %v847 = vunpack.c.l.s4 1983009808
        %v848 = vunpack.c.0.s8 %v847
        %v849 = vlaneseq
        %v850 = vshrl.u32 %v849, 7
        %v851 = vsub.s32 %v848, %v850
        %v852 = vrot.slane %v844, %v851
        %v854 = vunpack.c.l.s4 1983009808
        %v855 = vunpack.c.0.s8 %v854
        %v856 = vlaneseq
        %v857 = vshrl.u32 %v856, 7
        %v858 = vsub.s32 %v855, %v857
        %v859 = vrot.slane %v845, %v858
        %v860 = vcombine.low %v804, %v820
        %v861 = vcombine.high %v804, %v820
        %v863 = vunpack.c.l.s4 1934713408
        %v864 = vunpack.c.0.s8 %v863
        %v865 = vlaneseq
        %v866 = vshrl.u32 %v865, 7
        %v867 = vsub.s32 %v864, %v866
        %v868 = vrot.slane %v860, %v867
        %v870 = vunpack.c.l.s4 1934713408
        %v871 = vunpack.c.0.s8 %v870
        %v872 = vlaneseq
        %v873 = vshrl.u32 %v872, 7
        %v874 = vsub.s32 %v871, %v873
        %v875 = vrot.slane %v861, %v874
        %v876 = vcombine.low %v811, %v827
        %v877 = vcombine.high %v811, %v827
        %v879 = vunpack.c.l.s4 1934713408
        %v880 = vunpack.c.0.s8 %v879
        %v881 = vlaneseq
        %v882 = vshrl.u32 %v881, 7
        %v883 = vsub.s32 %v880, %v882
        %v884 = vrot.slane %v876, %v883
        %v886 = vunpack.c.l.s4 1934713408
        %v887 = vunpack.c.0.s8 %v886
        %v888 = vlaneseq
        %v889 = vshrl.u32 %v888, 7
        %v890 = vsub.s32 %v887, %v889
        %v891 = vrot.slane %v877, %v890
        %v892 = vcombine.low %v836, %v852
        %v893 = vcombine.high %v836, %v852
        %v895 = vunpack.c.l.s4 1934713408
        %v896 = vunpack.c.0.s8 %v895
        %v897 = vlaneseq
        %v898 = vshrl.u32 %v897, 7
        %v899 = vsub.s32 %v896, %v898
        %v900 = vrot.slane %v892, %v899
        %v902 = vunpack.c.l.s4 1934713408
        %v903 = vunpack.c.0.s8 %v902
        %v904 = vlaneseq
        %v905 = vshrl.u32 %v904, 7
        %v906 = vsub.s32 %v903, %v905
        %v907 = vrot.slane %v893, %v906
        %v908 = vcombine.low %v843, %v859
        %v909 = vcombine.high %v843, %v859
        %v911 = vunpack.c.l.s4 1934713408
        %v912 = vunpack.c.0.s8 %v911
        %v913 = vlaneseq
        %v914 = vshrl.u32 %v913, 7
        %v915 = vsub.s32 %v912, %v914
        %v916 = vrot.slane %v908, %v915
        %v918 = vunpack.c.l.s4 1934713408
        %v919 = vunpack.c.0.s8 %v918
        %v920 = vlaneseq
        %v921 = vshrl.u32 %v920, 7
        %v922 = vsub.s32 %v919, %v921
        %v923 = vrot.slane %v909, %v922
        %v924 = vcombine.low %v868, %v900
        %v925 = vcombine.high %v868, %v900
        %v926 = vcombine.low %v875, %v907
        %v927 = vcombine.high %v875, %v907
        %v928 = vcombine.low %v884, %v916
        %v929 = vcombine.high %v884, %v916
        %v930 = vcombine.low %v891, %v923
        %v931 = vcombine.high %v891, %v923
        %948 = vrot.lane.b32.xlu0 %v788, 1
        %v949 = vpop.permute.xlu0 %948
        %950 = vrot.lane.b32.xlu0 %v924, 1
        %v951 = vpop.permute.xlu0 %950
        %952 = vrot.lane.b32.xlu0 %v789, 1
        %v953 = vpop.permute.xlu0 %952
        %954 = vrot.lane.b32.xlu0 %v925, 1
        %v955 = vpop.permute.xlu0 %954
        %956 = vrot.lane.b32.xlu0 %v790, 1
        %v957 = vpop.permute.xlu0 %956
        %958 = vrot.lane.b32.xlu0 %v926, 1
        %v959 = vpop.permute.xlu0 %958
        %960 = vrot.lane.b32.xlu0 %v791, 1
        %v961 = vpop.permute.xlu0 %960
        %962 = vrot.lane.b32.xlu0 %v927, 1
        %v963 = vpop.permute.xlu0 %962
        %964 = vrot.lane.b32.xlu0 %v792, 1
        %v965 = vpop.permute.xlu0 %964
        %966 = vrot.lane.b32.xlu0 %v928, 1
        %v967 = vpop.permute.xlu0 %966
        %968 = vrot.lane.b32.xlu0 %v793, 1
        %v969 = vpop.permute.xlu0 %968
        %970 = vrot.lane.b32.xlu0 %v929, 1
        %v971 = vpop.permute.xlu0 %970
        %972 = vrot.lane.b32.xlu0 %v794, 1
        %v973 = vpop.permute.xlu0 %972
        %974 = vrot.lane.b32.xlu0 %v930, 1
        %v975 = vpop.permute.xlu0 %974
        %976 = vrot.lane.b32.xlu0 %v795, 1
        %v977 = vpop.permute.xlu0 %976
        %978 = vrot.lane.b32.xlu0 %v931, 1
        %v979 = vpop.permute.xlu0 %978
        %vm996 = vcmask 138248
        %997 = vst.msk [vmem:[#allocation2 + $0x1] sm:$0xff] %vm996, %v949
        %998 = vst.msk [vmem:[#allocation2 + $0x9] sm:$0xff] %vm996, %v951
        %999 = vst.msk [vmem:[#allocation2 + $0x19] sm:$0xff] %vm996, %v953
        %1000 = vst.msk [vmem:[#allocation2 + $0x21] sm:$0xff] %vm996, %v955
        %1001 = vst.msk [vmem:[#allocation2 + $0x31] sm:$0xff] %vm996, %v957
        %1002 = vst.msk [vmem:[#allocation2 + $0x39] sm:$0xff] %vm996, %v959
        %1003 = vst.msk [vmem:[#allocation2 + $0x49] sm:$0xff] %vm996, %v961
        %1004 = vst.msk [vmem:[#allocation2 + $0x51] sm:$0xff] %vm996, %v963
        %1005 = vst.msk [vmem:[#allocation2 + $0x61] sm:$0xff] %vm996, %v965
        %1006 = vst.msk [vmem:[#allocation2 + $0x69] sm:$0xff] %vm996, %v967
        %1007 = vst.msk [vmem:[#allocation2 + $0x79] sm:$0xff] %vm996, %v969
        %1008 = vst.msk [vmem:[#allocation2 + $0x81] sm:$0xff] %vm996, %v971
        %1009 = vst.msk [vmem:[#allocation2 + $0x91] sm:$0xff] %vm996, %v973
        %1010 = vst.msk [vmem:[#allocation2 + $0x99] sm:$0xff] %vm996, %v975
        %1011 = vst.msk [vmem:[#allocation2 + $0xa9] sm:$0xff] %vm996, %v977
        %1012 = vst.msk [vmem:[#allocation2 + $0xb1] sm:$0xff] %vm996, %v979
        %v1013 = vld [vmem:[%s5] sm:$0xff]
        %v1014 = vld [vmem:[#allocation2] sm:$0xff]
        %v1015 = vld [vmem:[#allocation2 + $0x8] sm:$0xff]
        %v1016 = vld [vmem:[#allocation2 + $0x18] sm:$0xff]
        %v1017 = vld [vmem:[#allocation2 + $0x20] sm:$0xff]
        %v1018 = vld [vmem:[#allocation2 + $0x30] sm:$0xff]
        %v1019 = vld [vmem:[#allocation2 + $0x38] sm:$0xff]
        %v1020 = vld [vmem:[#allocation2 + $0x48] sm:$0xff]
        %v1021 = vld [vmem:[#allocation2 + $0x50] sm:$0xff]
        %v1022 = vld [vmem:[#allocation2 + $0x60] sm:$0xff]
        %v1023 = vld [vmem:[#allocation2 + $0x68] sm:$0xff]
        %v1024 = vld [vmem:[#allocation2 + $0x78] sm:$0xff]
        %v1025 = vld [vmem:[#allocation2 + $0x80] sm:$0xff]
        %v1026 = vld [vmem:[#allocation2 + $0x90] sm:$0xff]
        %v1027 = vld [vmem:[#allocation2 + $0x98] sm:$0xff]
        %v1028 = vld [vmem:[#allocation2 + $0xa8] sm:$0xff]
        %v1029 = vld [vmem:[#allocation2 + $0xb0] sm:$0xff]
        %v1031 = vcombine.high %v1013, %v1013
        %v1033 = vunpack.c.l.s4 1966171168
        %v1034 = vunpack.c.0.s8 %v1033
        %v1035 = vlaneseq
        %v1036 = vshrl.u32 %v1035, 7
        %v1037 = vsub.s32 %v1034, %v1036
        %v1038 = vrot.slane %v1013, %v1037
        %v1040 = vunpack.c.l.s4 1966171168
        %v1041 = vunpack.c.0.s8 %v1040
        %v1042 = vlaneseq
        %v1043 = vshrl.u32 %v1042, 7
        %v1044 = vsub.s32 %v1041, %v1043
        %v1045 = vrot.slane %v1031, %v1044
        %v1046 = vcombine.high %v1038, %v1038
        %v1047 = vcombine.high %v1045, %v1045
        %v1049 = vunpack.c.l.s4 1966171168
        %v1050 = vunpack.c.0.s8 %v1049
        %v1051 = vlaneseq
        %v1052 = vshrl.u32 %v1051, 7
        %v1053 = vsub.s32 %v1050, %v1052
        %v1054 = vrot.slane %v1038, %v1053
        %v1056 = vunpack.c.l.s4 1966171168
        %v1057 = vunpack.c.0.s8 %v1056
        %v1058 = vlaneseq
        %v1059 = vshrl.u32 %v1058, 7
        %v1060 = vsub.s32 %v1057, %v1059
        %v1061 = vrot.slane %v1045, %v1060
        %v1063 = vunpack.c.l.s4 1966171168
        %v1064 = vunpack.c.0.s8 %v1063
        %v1065 = vlaneseq
        %v1066 = vshrl.u32 %v1065, 7
        %v1067 = vsub.s32 %v1064, %v1066
        %v1068 = vrot.slane %v1046, %v1067
        %v1070 = vunpack.c.l.s4 1966171168
        %v1071 = vunpack.c.0.s8 %v1070
        %v1072 = vlaneseq
        %v1073 = vshrl.u32 %v1072, 7
        %v1074 = vsub.s32 %v1071, %v1073
        %v1075 = vrot.slane %v1047, %v1074
        %v1076 = vcombine.high %v1054, %v1054
        %v1077 = vcombine.high %v1061, %v1061
        %v1078 = vcombine.high %v1068, %v1068
        %v1079 = vcombine.high %v1075, %v1075
        %v1080 = vlaneseq
        %v1081 = vshrl.u32 %v1080, 7
        %v1082 = vsub.s32 0, %v1081
        %v1083 = vrot.slane %v1054, %v1082
        %v1084 = vlaneseq
        %v1085 = vshrl.u32 %v1084, 7
        %v1086 = vsub.s32 0, %v1085
        %v1087 = vrot.slane %v1068, %v1086
        %v1088 = vlaneseq
        %v1089 = vshrl.u32 %v1088, 7
        %v1090 = vsub.s32 0, %v1089
        %v1091 = vrot.slane %v1076, %v1090
        %v1092 = vlaneseq
        %v1093 = vshrl.u32 %v1092, 7
        %v1094 = vsub.s32 0, %v1093
        %v1095 = vrot.slane %v1078, %v1094
        %v1096 = vlaneseq
        %v1097 = vshrl.u32 %v1096, 7
        %v1098 = vsub.s32 0, %v1097
        %v1099 = vrot.slane %v1061, %v1098
        %v1100 = vlaneseq
        %v1101 = vshrl.u32 %v1100, 7
        %v1102 = vsub.s32 0, %v1101
        %v1103 = vrot.slane %v1075, %v1102
        %v1104 = vlaneseq
        %v1105 = vshrl.u32 %v1104, 7
        %v1106 = vsub.s32 0, %v1105
        %v1107 = vrot.slane %v1077, %v1106
        %v1108 = vlaneseq
        %v1109 = vshrl.u32 %v1108, 7
        %v1110 = vsub.s32 0, %v1109
        %v1111 = vrot.slane %v1079, %v1110
        %1112 = vset.pattern.permute.xlu0 0
        %1113 = vperm.xlu0 %1112, %v1083
        %v1114 = vpop.permute.xlu0 %1113
        %1116 = vset.pattern.permute.xlu0 0
        %1117 = vperm.xlu0 %1116, %v1087
        %v1118 = vpop.permute.xlu0 %1117
        %1120 = vset.pattern.permute.xlu0 0
        %1121 = vperm.xlu0 %1120, %v1091
        %v1122 = vpop.permute.xlu0 %1121
        %1124 = vset.pattern.permute.xlu0 0
        %1125 = vperm.xlu0 %1124, %v1095
        %v1126 = vpop.permute.xlu0 %1125
        %1128 = vset.pattern.permute.xlu0 0
        %1129 = vperm.xlu0 %1128, %v1099
        %v1130 = vpop.permute.xlu0 %1129
        %1132 = vset.pattern.permute.xlu0 0
        %1133 = vperm.xlu0 %1132, %v1103
        %v1134 = vpop.permute.xlu0 %1133
        %1136 = vset.pattern.permute.xlu0 0
        %1137 = vperm.xlu0 %1136, %v1107
        %v1138 = vpop.permute.xlu0 %1137
        %1140 = vset.pattern.permute.xlu0 0
        %1141 = vperm.xlu0 %1140, %v1111
        %v1142 = vpop.permute.xlu0 %1141
        %v1144 = vmul.f32 %v1014, %v1114
        %v1145 = vmul.f32 %v1015, %v1114
        %v1146 = vmul.f32 %v1016, %v1118
        %v1147 = vmul.f32 %v1017, %v1118
        %v1148 = vmul.f32 %v1018, %v1122
        %v1149 = vmul.f32 %v1019, %v1122
        %v1150 = vmul.f32 %v1020, %v1126
        %v1151 = vmul.f32 %v1021, %v1126
        %v1152 = vmul.f32 %v1022, %v1130
        %v1153 = vmul.f32 %v1023, %v1130
        %v1154 = vmul.f32 %v1024, %v1134
        %v1155 = vmul.f32 %v1025, %v1134
        %v1156 = vmul.f32 %v1026, %v1138
        %v1157 = vmul.f32 %v1027, %v1138
        %v1158 = vmul.f32 %v1028, %v1142
        %v1159 = vmul.f32 %v1029, %v1142
        %v1160 = vadd.f32 %v1144, 0.0
        %v1161 = vadd.f32 %v1145, 0.0
        %v1162 = vadd.f32 %v1146, 0.0
        %v1163 = vadd.f32 %v1147, 0.0
        %v1164 = vadd.f32 %v1148, 0.0
        %v1165 = vadd.f32 %v1149, 0.0
        %v1166 = vadd.f32 %v1150, 0.0
        %v1167 = vadd.f32 %v1151, 0.0
        %v1168 = vadd.f32 %v1152, 0.0
        %v1169 = vadd.f32 %v1153, 0.0
        %v1170 = vadd.f32 %v1154, 0.0
        %v1171 = vadd.f32 %v1155, 0.0
        %v1172 = vadd.f32 %v1156, 0.0
        %v1173 = vadd.f32 %v1157, 0.0
        %v1174 = vadd.f32 %v1158, 0.0
        %v1175 = vadd.f32 %v1159, 0.0
        %v1176 = vld [vmem:[#allocation2] sm:$0xff]
        %v1177 = vld [vmem:[#allocation2 + $0x8] sm:$0xff]
        %v1178 = vld [vmem:[#allocation2 + $0x18] sm:$0xff]
        %v1179 = vld [vmem:[#allocation2 + $0x20] sm:$0xff]
        %v1180 = vld [vmem:[#allocation2 + $0x30] sm:$0xff]
        %v1181 = vld [vmem:[#allocation2 + $0x38] sm:$0xff]
        %v1182 = vld [vmem:[#allocation2 + $0x48] sm:$0xff]
        %v1183 = vld [vmem:[#allocation2 + $0x50] sm:$0xff]
        %v1184 = vld [vmem:[#allocation2 + $0x60] sm:$0xff]
        %v1185 = vld [vmem:[#allocation2 + $0x68] sm:$0xff]
        %v1186 = vld [vmem:[#allocation2 + $0x78] sm:$0xff]
        %v1187 = vld [vmem:[#allocation2 + $0x80] sm:$0xff]
        %v1188 = vld [vmem:[#allocation2 + $0x90] sm:$0xff]
        %v1189 = vld [vmem:[#allocation2 + $0x98] sm:$0xff]
        %v1190 = vld [vmem:[#allocation2 + $0xa8] sm:$0xff]
        %v1191 = vld [vmem:[#allocation2 + $0xb0] sm:$0xff]
        %1192 = vset.pattern.permute.xlu0 1
        %1193 = vperm.xlu0 %1192, %v1083
        %v1194 = vpop.permute.xlu0 %1193
        %1196 = vset.pattern.permute.xlu0 1
        %1197 = vperm.xlu0 %1196, %v1087
        %v1198 = vpop.permute.xlu0 %1197
        %1200 = vset.pattern.permute.xlu0 1
        %1201 = vperm.xlu0 %1200, %v1091
        %v1202 = vpop.permute.xlu0 %1201
        %1204 = vset.pattern.permute.xlu0 1
        %1205 = vperm.xlu0 %1204, %v1095
        %v1206 = vpop.permute.xlu0 %1205
        %1208 = vset.pattern.permute.xlu0 1
        %1209 = vperm.xlu0 %1208, %v1099
        %v1210 = vpop.permute.xlu0 %1209
        %1212 = vset.pattern.permute.xlu0 1
        %1213 = vperm.xlu0 %1212, %v1103
        %v1214 = vpop.permute.xlu0 %1213
        %1216 = vset.pattern.permute.xlu0 1
        %1217 = vperm.xlu0 %1216, %v1107
        %v1218 = vpop.permute.xlu0 %1217
        %1220 = vset.pattern.permute.xlu0 1
        %1221 = vperm.xlu0 %1220, %v1111
        %v1222 = vpop.permute.xlu0 %1221
        %v1224 = vmul.f32 %v1176, %v1194
        %v1225 = vmul.f32 %v1177, %v1194
        %v1226 = vmul.f32 %v1178, %v1198
        %v1227 = vmul.f32 %v1179, %v1198
        %v1228 = vmul.f32 %v1180, %v1202
        %v1229 = vmul.f32 %v1181, %v1202
        %v1230 = vmul.f32 %v1182, %v1206
        %v1231 = vmul.f32 %v1183, %v1206
        %v1232 = vmul.f32 %v1184, %v1210
        %v1233 = vmul.f32 %v1185, %v1210
        %v1234 = vmul.f32 %v1186, %v1214
        %v1235 = vmul.f32 %v1187, %v1214
        %v1236 = vmul.f32 %v1188, %v1218
        %v1237 = vmul.f32 %v1189, %v1218
        %v1238 = vmul.f32 %v1190, %v1222
        %v1239 = vmul.f32 %v1191, %v1222
        %1256 = vrot.lane.b32.xlu0 %v1224, 127
        %v1257 = vpop.permute.xlu0 %1256
        %1258 = vrot.lane.b32.xlu0 %v1225, 127
        %v1259 = vpop.permute.xlu0 %1258
        %1260 = vrot.lane.b32.xlu0 %v1226, 127
        %v1261 = vpop.permute.xlu0 %1260
        %1262 = vrot.lane.b32.xlu0 %v1227, 127
        %v1263 = vpop.permute.xlu0 %1262
        %1264 = vrot.lane.b32.xlu0 %v1228, 127
        %v1265 = vpop.permute.xlu0 %1264
        %1266 = vrot.lane.b32.xlu0 %v1229, 127
        %v1267 = vpop.permute.xlu0 %1266
        %1268 = vrot.lane.b32.xlu0 %v1230, 127
        %v1269 = vpop.permute.xlu0 %1268
        %1270 = vrot.lane.b32.xlu0 %v1231, 127
        %v1271 = vpop.permute.xlu0 %1270
        %1272 = vrot.lane.b32.xlu0 %v1232, 127
        %v1273 = vpop.permute.xlu0 %1272
        %1274 = vrot.lane.b32.xlu0 %v1233, 127
        %v1275 = vpop.permute.xlu0 %1274
        %1276 = vrot.lane.b32.xlu0 %v1234, 127
        %v1277 = vpop.permute.xlu0 %1276
        %1278 = vrot.lane.b32.xlu0 %v1235, 127
        %v1279 = vpop.permute.xlu0 %1278
        %1280 = vrot.lane.b32.xlu0 %v1236, 127
        %v1281 = vpop.permute.xlu0 %1280
        %1282 = vrot.lane.b32.xlu0 %v1237, 127
        %v1283 = vpop.permute.xlu0 %1282
        %1284 = vrot.lane.b32.xlu0 %v1238, 127
        %v1285 = vpop.permute.xlu0 %1284
        %1286 = vrot.lane.b32.xlu0 %v1239, 127
        %v1287 = vpop.permute.xlu0 %1286
        %v1304 = vadd.f32 %v1160, %v1257
        %v1305 = vadd.f32 %v1161, %v1259
        %v1306 = vadd.f32 %v1162, %v1261
        %v1307 = vadd.f32 %v1163, %v1263
        %v1308 = vadd.f32 %v1164, %v1265
        %v1309 = vadd.f32 %v1165, %v1267
        %v1310 = vadd.f32 %v1166, %v1269
        %v1311 = vadd.f32 %v1167, %v1271
        %v1312 = vadd.f32 %v1168, %v1273
        %v1313 = vadd.f32 %v1169, %v1275
        %v1314 = vadd.f32 %v1170, %v1277
        %v1315 = vadd.f32 %v1171, %v1279
        %v1316 = vadd.f32 %v1172, %v1281
        %v1317 = vadd.f32 %v1173, %v1283
        %v1318 = vadd.f32 %v1174, %v1285
        %v1319 = vadd.f32 %v1175, %v1287
        %v1320 = vld [vmem:[#allocation2] sm:$0xff]
        %v1321 = vld [vmem:[#allocation2 + $0x8] sm:$0xff]
        %v1322 = vld [vmem:[#allocation2 + $0x18] sm:$0xff]
        %v1323 = vld [vmem:[#allocation2 + $0x20] sm:$0xff]
        %v1324 = vld [vmem:[#allocation2 + $0x30] sm:$0xff]
        %v1325 = vld [vmem:[#allocation2 + $0x38] sm:$0xff]
        %v1326 = vld [vmem:[#allocation2 + $0x48] sm:$0xff]
        %v1327 = vld [vmem:[#allocation2 + $0x50] sm:$0xff]
        %v1328 = vld [vmem:[#allocation2 + $0x60] sm:$0xff]
        %v1329 = vld [vmem:[#allocation2 + $0x68] sm:$0xff]
        %v1330 = vld [vmem:[#allocation2 + $0x78] sm:$0xff]
        %v1331 = vld [vmem:[#allocation2 + $0x80] sm:$0xff]
        %v1332 = vld [vmem:[#allocation2 + $0x90] sm:$0xff]
        %v1333 = vld [vmem:[#allocation2 + $0x98] sm:$0xff]
        %v1334 = vld [vmem:[#allocation2 + $0xa8] sm:$0xff]
        %v1335 = vld [vmem:[#allocation2 + $0xb0] sm:$0xff]
        %1336 = vset.pattern.permute.xlu0 2
        %1337 = vperm.xlu0 %1336, %v1083
        %v1338 = vpop.permute.xlu0 %1337
        %1340 = vset.pattern.permute.xlu0 2
        %1341 = vperm.xlu0 %1340, %v1087
        %v1342 = vpop.permute.xlu0 %1341
        %1344 = vset.pattern.permute.xlu0 2
        %1345 = vperm.xlu0 %1344, %v1091
        %v1346 = vpop.permute.xlu0 %1345
        %1348 = vset.pattern.permute.xlu0 2
        %1349 = vperm.xlu0 %1348, %v1095
        %v1350 = vpop.permute.xlu0 %1349
        %1352 = vset.pattern.permute.xlu0 2
        %1353 = vperm.xlu0 %1352, %v1099
        %v1354 = vpop.permute.xlu0 %1353
        %1356 = vset.pattern.permute.xlu0 2
        %1357 = vperm.xlu0 %1356, %v1103
        %v1358 = vpop.permute.xlu0 %1357
        %1360 = vset.pattern.permute.xlu0 2
        %1361 = vperm.xlu0 %1360, %v1107
        %v1362 = vpop.permute.xlu0 %1361
        %1364 = vset.pattern.permute.xlu0 2
        %1365 = vperm.xlu0 %1364, %v1111
        %v1366 = vpop.permute.xlu0 %1365
        %v1368 = vmul.f32 %v1320, %v1338
        %v1369 = vmul.f32 %v1321, %v1338
        %v1370 = vmul.f32 %v1322, %v1342
        %v1371 = vmul.f32 %v1323, %v1342
        %v1372 = vmul.f32 %v1324, %v1346
        %v1373 = vmul.f32 %v1325, %v1346
        %v1374 = vmul.f32 %v1326, %v1350
        %v1375 = vmul.f32 %v1327, %v1350
        %v1376 = vmul.f32 %v1328, %v1354
        %v1377 = vmul.f32 %v1329, %v1354
        %v1378 = vmul.f32 %v1330, %v1358
        %v1379 = vmul.f32 %v1331, %v1358
        %v1380 = vmul.f32 %v1332, %v1362
        %v1381 = vmul.f32 %v1333, %v1362
        %v1382 = vmul.f32 %v1334, %v1366
        %v1383 = vmul.f32 %v1335, %v1366
        %1400 = vrot.lane.b32.xlu0 %v1368, 126
        %v1401 = vpop.permute.xlu0 %1400
        %1402 = vrot.lane.b32.xlu0 %v1369, 126
        %v1403 = vpop.permute.xlu0 %1402
        %1404 = vrot.lane.b32.xlu0 %v1370, 126
        %v1405 = vpop.permute.xlu0 %1404
        %1406 = vrot.lane.b32.xlu0 %v1371, 126
        %v1407 = vpop.permute.xlu0 %1406
        %1408 = vrot.lane.b32.xlu0 %v1372, 126
        %v1409 = vpop.permute.xlu0 %1408
        %1410 = vrot.lane.b32.xlu0 %v1373, 126
        %v1411 = vpop.permute.xlu0 %1410
        %1412 = vrot.lane.b32.xlu0 %v1374, 126
        %v1413 = vpop.permute.xlu0 %1412
        %1414 = vrot.lane.b32.xlu0 %v1375, 126
        %v1415 = vpop.permute.xlu0 %1414
        %1416 = vrot.lane.b32.xlu0 %v1376, 126
        %v1417 = vpop.permute.xlu0 %1416
        %1418 = vrot.lane.b32.xlu0 %v1377, 126
        %v1419 = vpop.permute.xlu0 %1418
        %1420 = vrot.lane.b32.xlu0 %v1378, 126
        %v1421 = vpop.permute.xlu0 %1420
        %1422 = vrot.lane.b32.xlu0 %v1379, 126
        %v1423 = vpop.permute.xlu0 %1422
        %1424 = vrot.lane.b32.xlu0 %v1380, 126
        %v1425 = vpop.permute.xlu0 %1424
        %1426 = vrot.lane.b32.xlu0 %v1381, 126
        %v1427 = vpop.permute.xlu0 %1426
        %1428 = vrot.lane.b32.xlu0 %v1382, 126
        %v1429 = vpop.permute.xlu0 %1428
        %1430 = vrot.lane.b32.xlu0 %v1383, 126
        %v1431 = vpop.permute.xlu0 %1430
        %v1448 = vadd.f32 %v1304, %v1401
        %v1449 = vadd.f32 %v1305, %v1403
        %v1450 = vadd.f32 %v1306, %v1405
        %v1451 = vadd.f32 %v1307, %v1407
        %v1452 = vadd.f32 %v1308, %v1409
        %v1453 = vadd.f32 %v1309, %v1411
        %v1454 = vadd.f32 %v1310, %v1413
        %v1455 = vadd.f32 %v1311, %v1415
        %v1456 = vadd.f32 %v1312, %v1417
        %v1457 = vadd.f32 %v1313, %v1419
        %v1458 = vadd.f32 %v1314, %v1421
        %v1459 = vadd.f32 %v1315, %v1423
        %v1460 = vadd.f32 %v1316, %v1425
        %v1461 = vadd.f32 %v1317, %v1427
        %v1462 = vadd.f32 %v1318, %v1429
        %v1463 = vadd.f32 %v1319, %v1431
        %v1464 = vld [vmem:[#allocation2 + $0x1] sm:$0xff]
        %v1465 = vld [vmem:[#allocation2 + $0x9] sm:$0xff]
        %v1466 = vld [vmem:[#allocation2 + $0x19] sm:$0xff]
        %v1467 = vld [vmem:[#allocation2 + $0x21] sm:$0xff]
        %v1468 = vld [vmem:[#allocation2 + $0x31] sm:$0xff]
        %v1469 = vld [vmem:[#allocation2 + $0x39] sm:$0xff]
        %v1470 = vld [vmem:[#allocation2 + $0x49] sm:$0xff]
        %v1471 = vld [vmem:[#allocation2 + $0x51] sm:$0xff]
        %v1472 = vld [vmem:[#allocation2 + $0x61] sm:$0xff]
        %v1473 = vld [vmem:[#allocation2 + $0x69] sm:$0xff]
        %v1474 = vld [vmem:[#allocation2 + $0x79] sm:$0xff]
        %v1475 = vld [vmem:[#allocation2 + $0x81] sm:$0xff]
        %v1476 = vld [vmem:[#allocation2 + $0x91] sm:$0xff]
        %v1477 = vld [vmem:[#allocation2 + $0x99] sm:$0xff]
        %v1478 = vld [vmem:[#allocation2 + $0xa9] sm:$0xff]
        %v1479 = vld [vmem:[#allocation2 + $0xb1] sm:$0xff]
        %1480 = vset.pattern.permute.xlu0 3
        %1481 = vperm.xlu0 %1480, %v1083
        %v1482 = vpop.permute.xlu0 %1481
        %1484 = vset.pattern.permute.xlu0 3
        %1485 = vperm.xlu0 %1484, %v1087
        %v1486 = vpop.permute.xlu0 %1485
        %1488 = vset.pattern.permute.xlu0 3
        %1489 = vperm.xlu0 %1488, %v1091
        %v1490 = vpop.permute.xlu0 %1489
        %1492 = vset.pattern.permute.xlu0 3
        %1493 = vperm.xlu0 %1492, %v1095
        %v1494 = vpop.permute.xlu0 %1493
        %1496 = vset.pattern.permute.xlu0 3
        %1497 = vperm.xlu0 %1496, %v1099
        %v1498 = vpop.permute.xlu0 %1497
        %1500 = vset.pattern.permute.xlu0 3
        %1501 = vperm.xlu0 %1500, %v1103
        %v1502 = vpop.permute.xlu0 %1501
        %1504 = vset.pattern.permute.xlu0 3
        %1505 = vperm.xlu0 %1504, %v1107
        %v1506 = vpop.permute.xlu0 %1505
        %1508 = vset.pattern.permute.xlu0 3
        %1509 = vperm.xlu0 %1508, %v1111
        %v1510 = vpop.permute.xlu0 %1509
        %v1512 = vmul.f32 %v1464, %v1482
        %v1513 = vmul.f32 %v1465, %v1482
        %v1514 = vmul.f32 %v1466, %v1486
        %v1515 = vmul.f32 %v1467, %v1486
        %v1516 = vmul.f32 %v1468, %v1490
        %v1517 = vmul.f32 %v1469, %v1490
        %v1518 = vmul.f32 %v1470, %v1494
        %v1519 = vmul.f32 %v1471, %v1494
        %v1520 = vmul.f32 %v1472, %v1498
        %v1521 = vmul.f32 %v1473, %v1498
        %v1522 = vmul.f32 %v1474, %v1502
        %v1523 = vmul.f32 %v1475, %v1502
        %v1524 = vmul.f32 %v1476, %v1506
        %v1525 = vmul.f32 %v1477, %v1506
        %v1526 = vmul.f32 %v1478, %v1510
        %v1527 = vmul.f32 %v1479, %v1510
        %v1528 = vadd.f32 %v1448, %v1512
        %v1529 = vadd.f32 %v1449, %v1513
        %v1530 = vadd.f32 %v1450, %v1514
        %v1531 = vadd.f32 %v1451, %v1515
        %v1532 = vadd.f32 %v1452, %v1516
        %v1533 = vadd.f32 %v1453, %v1517
        %v1534 = vadd.f32 %v1454, %v1518
        %v1535 = vadd.f32 %v1455, %v1519
        %v1536 = vadd.f32 %v1456, %v1520
        %v1537 = vadd.f32 %v1457, %v1521
        %v1538 = vadd.f32 %v1458, %v1522
        %v1539 = vadd.f32 %v1459, %v1523
        %v1540 = vadd.f32 %v1460, %v1524
        %v1541 = vadd.f32 %v1461, %v1525
        %v1542 = vadd.f32 %v1462, %v1526
        %v1543 = vadd.f32 %v1463, %v1527
        %v1544 = vld [vmem:[#allocation2 + $0x1] sm:$0xff]
        %v1545 = vld [vmem:[#allocation2 + $0x9] sm:$0xff]
        %v1546 = vld [vmem:[#allocation2 + $0x19] sm:$0xff]
        %v1547 = vld [vmem:[#allocation2 + $0x21] sm:$0xff]
        %v1548 = vld [vmem:[#allocation2 + $0x31] sm:$0xff]
        %v1549 = vld [vmem:[#allocation2 + $0x39] sm:$0xff]
        %v1550 = vld [vmem:[#allocation2 + $0x49] sm:$0xff]
        %v1551 = vld [vmem:[#allocation2 + $0x51] sm:$0xff]
        %v1552 = vld [vmem:[#allocation2 + $0x61] sm:$0xff]
        %v1553 = vld [vmem:[#allocation2 + $0x69] sm:$0xff]
        %v1554 = vld [vmem:[#allocation2 + $0x79] sm:$0xff]
        %v1555 = vld [vmem:[#allocation2 + $0x81] sm:$0xff]
        %v1556 = vld [vmem:[#allocation2 + $0x91] sm:$0xff]
        %v1557 = vld [vmem:[#allocation2 + $0x99] sm:$0xff]
        %v1558 = vld [vmem:[#allocation2 + $0xa9] sm:$0xff]
        %v1559 = vld [vmem:[#allocation2 + $0xb1] sm:$0xff]
        %1560 = vset.pattern.permute.xlu0 4
        %1561 = vperm.xlu0 %1560, %v1083
        %v1562 = vpop.permute.xlu0 %1561
        %1564 = vset.pattern.permute.xlu0 4
        %1565 = vperm.xlu0 %1564, %v1087
        %v1566 = vpop.permute.xlu0 %1565
        %1568 = vset.pattern.permute.xlu0 4
        %1569 = vperm.xlu0 %1568, %v1091
        %v1570 = vpop.permute.xlu0 %1569
        %1572 = vset.pattern.permute.xlu0 4
        %1573 = vperm.xlu0 %1572, %v1095
        %v1574 = vpop.permute.xlu0 %1573
        %1576 = vset.pattern.permute.xlu0 4
        %1577 = vperm.xlu0 %1576, %v1099
        %v1578 = vpop.permute.xlu0 %1577
        %1580 = vset.pattern.permute.xlu0 4
        %1581 = vperm.xlu0 %1580, %v1103
        %v1582 = vpop.permute.xlu0 %1581
        %1584 = vset.pattern.permute.xlu0 4
        %1585 = vperm.xlu0 %1584, %v1107
        %v1586 = vpop.permute.xlu0 %1585
        %1588 = vset.pattern.permute.xlu0 4
        %1589 = vperm.xlu0 %1588, %v1111
        %v1590 = vpop.permute.xlu0 %1589
        %v1592 = vmul.f32 %v1544, %v1562
        %v1593 = vmul.f32 %v1545, %v1562
        %v1594 = vmul.f32 %v1546, %v1566
        %v1595 = vmul.f32 %v1547, %v1566
        %v1596 = vmul.f32 %v1548, %v1570
        %v1597 = vmul.f32 %v1549, %v1570
        %v1598 = vmul.f32 %v1550, %v1574
        %v1599 = vmul.f32 %v1551, %v1574
        %v1600 = vmul.f32 %v1552, %v1578
        %v1601 = vmul.f32 %v1553, %v1578
        %v1602 = vmul.f32 %v1554, %v1582
        %v1603 = vmul.f32 %v1555, %v1582
        %v1604 = vmul.f32 %v1556, %v1586
        %v1605 = vmul.f32 %v1557, %v1586
        %v1606 = vmul.f32 %v1558, %v1590
        %v1607 = vmul.f32 %v1559, %v1590
        %1624 = vrot.lane.b32.xlu0 %v1592, 127
        %v1625 = vpop.permute.xlu0 %1624
        %1626 = vrot.lane.b32.xlu0 %v1593, 127
        %v1627 = vpop.permute.xlu0 %1626
        %1628 = vrot.lane.b32.xlu0 %v1594, 127
        %v1629 = vpop.permute.xlu0 %1628
        %1630 = vrot.lane.b32.xlu0 %v1595, 127
        %v1631 = vpop.permute.xlu0 %1630
        %1632 = vrot.lane.b32.xlu0 %v1596, 127
        %v1633 = vpop.permute.xlu0 %1632
        %1634 = vrot.lane.b32.xlu0 %v1597, 127
        %v1635 = vpop.permute.xlu0 %1634
        %1636 = vrot.lane.b32.xlu0 %v1598, 127
        %v1637 = vpop.permute.xlu0 %1636
        %1638 = vrot.lane.b32.xlu0 %v1599, 127
        %v1639 = vpop.permute.xlu0 %1638
        %1640 = vrot.lane.b32.xlu0 %v1600, 127
        %v1641 = vpop.permute.xlu0 %1640
        %1642 = vrot.lane.b32.xlu0 %v1601, 127
        %v1643 = vpop.permute.xlu0 %1642
        %1644 = vrot.lane.b32.xlu0 %v1602, 127
        %v1645 = vpop.permute.xlu0 %1644
        %1646 = vrot.lane.b32.xlu0 %v1603, 127
        %v1647 = vpop.permute.xlu0 %1646
        %1648 = vrot.lane.b32.xlu0 %v1604, 127
        %v1649 = vpop.permute.xlu0 %1648
        %1650 = vrot.lane.b32.xlu0 %v1605, 127
        %v1651 = vpop.permute.xlu0 %1650
        %1652 = vrot.lane.b32.xlu0 %v1606, 127
        %v1653 = vpop.permute.xlu0 %1652
        %1654 = vrot.lane.b32.xlu0 %v1607, 127
        %v1655 = vpop.permute.xlu0 %1654
        %v1672 = vadd.f32 %v1528, %v1625
        %v1673 = vadd.f32 %v1529, %v1627
        %v1674 = vadd.f32 %v1530, %v1629
        %v1675 = vadd.f32 %v1531, %v1631
        %v1676 = vadd.f32 %v1532, %v1633
        %v1677 = vadd.f32 %v1533, %v1635
        %v1678 = vadd.f32 %v1534, %v1637
        %v1679 = vadd.f32 %v1535, %v1639
        %v1680 = vadd.f32 %v1536, %v1641
        %v1681 = vadd.f32 %v1537, %v1643
        %v1682 = vadd.f32 %v1538, %v1645
        %v1683 = vadd.f32 %v1539, %v1647
        %v1684 = vadd.f32 %v1540, %v1649
        %v1685 = vadd.f32 %v1541, %v1651
        %v1686 = vadd.f32 %v1542, %v1653
        %v1687 = vadd.f32 %v1543, %v1655
        %v1688 = vld [vmem:[#allocation2 + $0x1] sm:$0xff]
        %v1689 = vld [vmem:[#allocation2 + $0x9] sm:$0xff]
        %v1690 = vld [vmem:[#allocation2 + $0x19] sm:$0xff]
        %v1691 = vld [vmem:[#allocation2 + $0x21] sm:$0xff]
        %v1692 = vld [vmem:[#allocation2 + $0x31] sm:$0xff]
        %v1693 = vld [vmem:[#allocation2 + $0x39] sm:$0xff]
        %v1694 = vld [vmem:[#allocation2 + $0x49] sm:$0xff]
        %v1695 = vld [vmem:[#allocation2 + $0x51] sm:$0xff]
        %v1696 = vld [vmem:[#allocation2 + $0x61] sm:$0xff]
        %v1697 = vld [vmem:[#allocation2 + $0x69] sm:$0xff]
        %v1698 = vld [vmem:[#allocation2 + $0x79] sm:$0xff]
        %v1699 = vld [vmem:[#allocation2 + $0x81] sm:$0xff]
        %v1700 = vld [vmem:[#allocation2 + $0x91] sm:$0xff]
        %v1701 = vld [vmem:[#allocation2 + $0x99] sm:$0xff]
        %v1702 = vld [vmem:[#allocation2 + $0xa9] sm:$0xff]
        %v1703 = vld [vmem:[#allocation2 + $0xb1] sm:$0xff]
        %1704 = vset.pattern.permute.xlu0 5
        %1705 = vperm.xlu0 %1704, %v1083
        %v1706 = vpop.permute.xlu0 %1705
        %1708 = vset.pattern.permute.xlu0 5
        %1709 = vperm.xlu0 %1708, %v1087
        %v1710 = vpop.permute.xlu0 %1709
        %1712 = vset.pattern.permute.xlu0 5
        %1713 = vperm.xlu0 %1712, %v1091
        %v1714 = vpop.permute.xlu0 %1713
        %1716 = vset.pattern.permute.xlu0 5
        %1717 = vperm.xlu0 %1716, %v1095
        %v1718 = vpop.permute.xlu0 %1717
        %1720 = vset.pattern.permute.xlu0 5
        %1721 = vperm.xlu0 %1720, %v1099
        %v1722 = vpop.permute.xlu0 %1721
        %1724 = vset.pattern.permute.xlu0 5
        %1725 = vperm.xlu0 %1724, %v1103
        %v1726 = vpop.permute.xlu0 %1725
        %1728 = vset.pattern.permute.xlu0 5
        %1729 = vperm.xlu0 %1728, %v1107
        %v1730 = vpop.permute.xlu0 %1729
        %1732 = vset.pattern.permute.xlu0 5
        %1733 = vperm.xlu0 %1732, %v1111
        %v1734 = vpop.permute.xlu0 %1733
        %v1736 = vmul.f32 %v1688, %v1706
        %v1737 = vmul.f32 %v1689, %v1706
        %v1738 = vmul.f32 %v1690, %v1710
        %v1739 = vmul.f32 %v1691, %v1710
        %v1740 = vmul.f32 %v1692, %v1714
        %v1741 = vmul.f32 %v1693, %v1714
        %v1742 = vmul.f32 %v1694, %v1718
        %v1743 = vmul.f32 %v1695, %v1718
        %v1744 = vmul.f32 %v1696, %v1722
        %v1745 = vmul.f32 %v1697, %v1722
        %v1746 = vmul.f32 %v1698, %v1726
        %v1747 = vmul.f32 %v1699, %v1726
        %v1748 = vmul.f32 %v1700, %v1730
        %v1749 = vmul.f32 %v1701, %v1730
        %v1750 = vmul.f32 %v1702, %v1734
        %v1751 = vmul.f32 %v1703, %v1734
        %1768 = vrot.lane.b32.xlu0 %v1736, 126
        %v1769 = vpop.permute.xlu0 %1768
        %1770 = vrot.lane.b32.xlu0 %v1737, 126
        %v1771 = vpop.permute.xlu0 %1770
        %1772 = vrot.lane.b32.xlu0 %v1738, 126
        %v1773 = vpop.permute.xlu0 %1772
        %1774 = vrot.lane.b32.xlu0 %v1739, 126
        %v1775 = vpop.permute.xlu0 %1774
        %1776 = vrot.lane.b32.xlu0 %v1740, 126
        %v1777 = vpop.permute.xlu0 %1776
        %1778 = vrot.lane.b32.xlu0 %v1741, 126
        %v1779 = vpop.permute.xlu0 %1778
        %1780 = vrot.lane.b32.xlu0 %v1742, 126
        %v1781 = vpop.permute.xlu0 %1780
        %1782 = vrot.lane.b32.xlu0 %v1743, 126
        %v1783 = vpop.permute.xlu0 %1782
        %1784 = vrot.lane.b32.xlu0 %v1744, 126
        %v1785 = vpop.permute.xlu0 %1784
        %1786 = vrot.lane.b32.xlu0 %v1745, 126
        %v1787 = vpop.permute.xlu0 %1786
        %1788 = vrot.lane.b32.xlu0 %v1746, 126
        %v1789 = vpop.permute.xlu0 %1788
        %1790 = vrot.lane.b32.xlu0 %v1747, 126
        %v1791 = vpop.permute.xlu0 %1790
        %1792 = vrot.lane.b32.xlu0 %v1748, 126
        %v1793 = vpop.permute.xlu0 %1792
        %1794 = vrot.lane.b32.xlu0 %v1749, 126
        %v1795 = vpop.permute.xlu0 %1794
        %1796 = vrot.lane.b32.xlu0 %v1750, 126
        %v1797 = vpop.permute.xlu0 %1796
        %1798 = vrot.lane.b32.xlu0 %v1751, 126
        %v1799 = vpop.permute.xlu0 %1798
        %v1816 = vadd.f32 %v1672, %v1769
        %v1817 = vadd.f32 %v1673, %v1771
        %v1818 = vadd.f32 %v1674, %v1773
        %v1819 = vadd.f32 %v1675, %v1775
        %v1820 = vadd.f32 %v1676, %v1777
        %v1821 = vadd.f32 %v1677, %v1779
        %v1822 = vadd.f32 %v1678, %v1781
        %v1823 = vadd.f32 %v1679, %v1783
        %v1824 = vadd.f32 %v1680, %v1785
        %v1825 = vadd.f32 %v1681, %v1787
        %v1826 = vadd.f32 %v1682, %v1789
        %v1827 = vadd.f32 %v1683, %v1791
        %v1828 = vadd.f32 %v1684, %v1793
        %v1829 = vadd.f32 %v1685, %v1795
        %v1830 = vadd.f32 %v1686, %v1797
        %v1831 = vadd.f32 %v1687, %v1799
        %v1832 = vld [vmem:[#allocation2 + $0x2] sm:$0xff]
        %v1833 = vld [vmem:[#allocation2 + $0xa] sm:$0xff]
        %v1834 = vld [vmem:[#allocation2 + $0x1a] sm:$0xff]
        %v1835 = vld [vmem:[#allocation2 + $0x22] sm:$0xff]
        %v1836 = vld [vmem:[#allocation2 + $0x32] sm:$0xff]
        %v1837 = vld [vmem:[#allocation2 + $0x3a] sm:$0xff]
        %v1838 = vld [vmem:[#allocation2 + $0x4a] sm:$0xff]
        %v1839 = vld [vmem:[#allocation2 + $0x52] sm:$0xff]
        %v1840 = vld [vmem:[#allocation2 + $0x62] sm:$0xff]
        %v1841 = vld [vmem:[#allocation2 + $0x6a] sm:$0xff]
        %v1842 = vld [vmem:[#allocation2 + $0x7a] sm:$0xff]
        %v1843 = vld [vmem:[#allocation2 + $0x82] sm:$0xff]
        %v1844 = vld [vmem:[#allocation2 + $0x92] sm:$0xff]
        %v1845 = vld [vmem:[#allocation2 + $0x9a] sm:$0xff]
        %v1846 = vld [vmem:[#allocation2 + $0xaa] sm:$0xff]
        %v1847 = vld [vmem:[#allocation2 + $0xb2] sm:$0xff]
        %1848 = vset.pattern.permute.xlu0 6
        %1849 = vperm.xlu0 %1848, %v1083
        %v1850 = vpop.permute.xlu0 %1849
        %1852 = vset.pattern.permute.xlu0 6
        %1853 = vperm.xlu0 %1852, %v1087
        %v1854 = vpop.permute.xlu0 %1853
        %1856 = vset.pattern.permute.xlu0 6
        %1857 = vperm.xlu0 %1856, %v1091
        %v1858 = vpop.permute.xlu0 %1857
        %1860 = vset.pattern.permute.xlu0 6
        %1861 = vperm.xlu0 %1860, %v1095
        %v1862 = vpop.permute.xlu0 %1861
        %1864 = vset.pattern.permute.xlu0 6
        %1865 = vperm.xlu0 %1864, %v1099
        %v1866 = vpop.permute.xlu0 %1865
        %1868 = vset.pattern.permute.xlu0 6
        %1869 = vperm.xlu0 %1868, %v1103
        %v1870 = vpop.permute.xlu0 %1869
        %1872 = vset.pattern.permute.xlu0 6
        %1873 = vperm.xlu0 %1872, %v1107
        %v1874 = vpop.permute.xlu0 %1873
        %1876 = vset.pattern.permute.xlu0 6
        %1877 = vperm.xlu0 %1876, %v1111
        %v1878 = vpop.permute.xlu0 %1877
        %v1880 = vmul.f32 %v1832, %v1850
        %v1881 = vmul.f32 %v1833, %v1850
        %v1882 = vmul.f32 %v1834, %v1854
        %v1883 = vmul.f32 %v1835, %v1854
        %v1884 = vmul.f32 %v1836, %v1858
        %v1885 = vmul.f32 %v1837, %v1858
        %v1886 = vmul.f32 %v1838, %v1862
        %v1887 = vmul.f32 %v1839, %v1862
        %v1888 = vmul.f32 %v1840, %v1866
        %v1889 = vmul.f32 %v1841, %v1866
        %v1890 = vmul.f32 %v1842, %v1870
        %v1891 = vmul.f32 %v1843, %v1870
        %v1892 = vmul.f32 %v1844, %v1874
        %v1893 = vmul.f32 %v1845, %v1874
        %v1894 = vmul.f32 %v1846, %v1878
        %v1895 = vmul.f32 %v1847, %v1878
        %v1896 = vadd.f32 %v1816, %v1880
        %v1897 = vadd.f32 %v1817, %v1881
        %v1898 = vadd.f32 %v1818, %v1882
        %v1899 = vadd.f32 %v1819, %v1883
        %v1900 = vadd.f32 %v1820, %v1884
        %v1901 = vadd.f32 %v1821, %v1885
        %v1902 = vadd.f32 %v1822, %v1886
        %v1903 = vadd.f32 %v1823, %v1887
        %v1904 = vadd.f32 %v1824, %v1888
        %v1905 = vadd.f32 %v1825, %v1889
        %v1906 = vadd.f32 %v1826, %v1890
        %v1907 = vadd.f32 %v1827, %v1891
        %v1908 = vadd.f32 %v1828, %v1892
        %v1909 = vadd.f32 %v1829, %v1893
        %v1910 = vadd.f32 %v1830, %v1894
        %v1911 = vadd.f32 %v1831, %v1895
        %v1912 = vld [vmem:[#allocation2 + $0x2] sm:$0xff]
        %v1913 = vld [vmem:[#allocation2 + $0xa] sm:$0xff]
        %v1914 = vld [vmem:[#allocation2 + $0x1a] sm:$0xff]
        %v1915 = vld [vmem:[#allocation2 + $0x22] sm:$0xff]
        %v1916 = vld [vmem:[#allocation2 + $0x32] sm:$0xff]
        %v1917 = vld [vmem:[#allocation2 + $0x3a] sm:$0xff]
        %v1918 = vld [vmem:[#allocation2 + $0x4a] sm:$0xff]
        %v1919 = vld [vmem:[#allocation2 + $0x52] sm:$0xff]
        %v1920 = vld [vmem:[#allocation2 + $0x62] sm:$0xff]
        %v1921 = vld [vmem:[#allocation2 + $0x6a] sm:$0xff]
        %v1922 = vld [vmem:[#allocation2 + $0x7a] sm:$0xff]
        %v1923 = vld [vmem:[#allocation2 + $0x82] sm:$0xff]
        %v1924 = vld [vmem:[#allocation2 + $0x92] sm:$0xff]
        %v1925 = vld [vmem:[#allocation2 + $0x9a] sm:$0xff]
        %v1926 = vld [vmem:[#allocation2 + $0xaa] sm:$0xff]
        %v1927 = vld [vmem:[#allocation2 + $0xb2] sm:$0xff]
        %1928 = vset.pattern.permute.xlu0 7
        %1929 = vperm.xlu0 %1928, %v1083
        %v1930 = vpop.permute.xlu0 %1929
        %1932 = vset.pattern.permute.xlu0 7
        %1933 = vperm.xlu0 %1932, %v1087
        %v1934 = vpop.permute.xlu0 %1933
        %1936 = vset.pattern.permute.xlu0 7
        %1937 = vperm.xlu0 %1936, %v1091
        %v1938 = vpop.permute.xlu0 %1937
        %1940 = vset.pattern.permute.xlu0 7
        %1941 = vperm.xlu0 %1940, %v1095
        %v1942 = vpop.permute.xlu0 %1941
        %1944 = vset.pattern.permute.xlu0 7
        %1945 = vperm.xlu0 %1944, %v1099
        %v1946 = vpop.permute.xlu0 %1945
        %1948 = vset.pattern.permute.xlu0 7
        %1949 = vperm.xlu0 %1948, %v1103
        %v1950 = vpop.permute.xlu0 %1949
        %1952 = vset.pattern.permute.xlu0 7
        %1953 = vperm.xlu0 %1952, %v1107
        %v1954 = vpop.permute.xlu0 %1953
        %1956 = vset.pattern.permute.xlu0 7
        %1957 = vperm.xlu0 %1956, %v1111
        %v1958 = vpop.permute.xlu0 %1957
        %v1960 = vmul.f32 %v1912, %v1930
        %v1961 = vmul.f32 %v1913, %v1930
        %v1962 = vmul.f32 %v1914, %v1934
        %v1963 = vmul.f32 %v1915, %v1934
        %v1964 = vmul.f32 %v1916, %v1938
        %v1965 = vmul.f32 %v1917, %v1938
        %v1966 = vmul.f32 %v1918, %v1942
        %v1967 = vmul.f32 %v1919, %v1942
        %v1968 = vmul.f32 %v1920, %v1946
        %v1969 = vmul.f32 %v1921, %v1946
        %v1970 = vmul.f32 %v1922, %v1950
        %v1971 = vmul.f32 %v1923, %v1950
        %v1972 = vmul.f32 %v1924, %v1954
        %v1973 = vmul.f32 %v1925, %v1954
        %v1974 = vmul.f32 %v1926, %v1958
        %v1975 = vmul.f32 %v1927, %v1958
        %1992 = vrot.lane.b32.xlu0 %v1960, 127
        %v1993 = vpop.permute.xlu0 %1992
        %1994 = vrot.lane.b32.xlu0 %v1961, 127
        %v1995 = vpop.permute.xlu0 %1994
        %1996 = vrot.lane.b32.xlu0 %v1962, 127
        %v1997 = vpop.permute.xlu0 %1996
        %1998 = vrot.lane.b32.xlu0 %v1963, 127
        %v1999 = vpop.permute.xlu0 %1998
        %2000 = vrot.lane.b32.xlu0 %v1964, 127
        %v2001 = vpop.permute.xlu0 %2000
        %2002 = vrot.lane.b32.xlu0 %v1965, 127
        %v2003 = vpop.permute.xlu0 %2002
        %2004 = vrot.lane.b32.xlu0 %v1966, 127
        %v2005 = vpop.permute.xlu0 %2004
        %2006 = vrot.lane.b32.xlu0 %v1967, 127
        %v2007 = vpop.permute.xlu0 %2006
        %2008 = vrot.lane.b32.xlu0 %v1968, 127
        %v2009 = vpop.permute.xlu0 %2008
        %2010 = vrot.lane.b32.xlu0 %v1969, 127
        %v2011 = vpop.permute.xlu0 %2010
        %2012 = vrot.lane.b32.xlu0 %v1970, 127
        %v2013 = vpop.permute.xlu0 %2012
        %2014 = vrot.lane.b32.xlu0 %v1971, 127
        %v2015 = vpop.permute.xlu0 %2014
        %2016 = vrot.lane.b32.xlu0 %v1972, 127
        %v2017 = vpop.permute.xlu0 %2016
        %2018 = vrot.lane.b32.xlu0 %v1973, 127
        %v2019 = vpop.permute.xlu0 %2018
        %2020 = vrot.lane.b32.xlu0 %v1974, 127
        %v2021 = vpop.permute.xlu0 %2020
        %2022 = vrot.lane.b32.xlu0 %v1975, 127
        %v2023 = vpop.permute.xlu0 %2022
        %v2040 = vadd.f32 %v1896, %v1993
        %v2041 = vadd.f32 %v1897, %v1995
        %v2042 = vadd.f32 %v1898, %v1997
        %v2043 = vadd.f32 %v1899, %v1999
        %v2044 = vadd.f32 %v1900, %v2001
        %v2045 = vadd.f32 %v1901, %v2003
        %v2046 = vadd.f32 %v1902, %v2005
        %v2047 = vadd.f32 %v1903, %v2007
        %v2048 = vadd.f32 %v1904, %v2009
        %v2049 = vadd.f32 %v1905, %v2011
        %v2050 = vadd.f32 %v1906, %v2013
        %v2051 = vadd.f32 %v1907, %v2015
        %v2052 = vadd.f32 %v1908, %v2017
        %v2053 = vadd.f32 %v1909, %v2019
        %v2054 = vadd.f32 %v1910, %v2021
        %v2055 = vadd.f32 %v1911, %v2023
        %v2056 = vld [vmem:[#allocation2 + $0x2] sm:$0xff]
        %v2057 = vld [vmem:[#allocation2 + $0xa] sm:$0xff]
        %v2058 = vld [vmem:[#allocation2 + $0x1a] sm:$0xff]
        %v2059 = vld [vmem:[#allocation2 + $0x22] sm:$0xff]
        %v2060 = vld [vmem:[#allocation2 + $0x32] sm:$0xff]
        %v2061 = vld [vmem:[#allocation2 + $0x3a] sm:$0xff]
        %v2062 = vld [vmem:[#allocation2 + $0x4a] sm:$0xff]
        %v2063 = vld [vmem:[#allocation2 + $0x52] sm:$0xff]
        %v2064 = vld [vmem:[#allocation2 + $0x62] sm:$0xff]
        %v2065 = vld [vmem:[#allocation2 + $0x6a] sm:$0xff]
        %v2066 = vld [vmem:[#allocation2 + $0x7a] sm:$0xff]
        %v2067 = vld [vmem:[#allocation2 + $0x82] sm:$0xff]
        %v2068 = vld [vmem:[#allocation2 + $0x92] sm:$0xff]
        %v2069 = vld [vmem:[#allocation2 + $0x9a] sm:$0xff]
        %v2070 = vld [vmem:[#allocation2 + $0xaa] sm:$0xff]
        %v2071 = vld [vmem:[#allocation2 + $0xb2] sm:$0xff]
        %2072 = vset.pattern.permute.xlu0 8
        %2073 = vperm.xlu0 %2072, %v1083
        %v2074 = vpop.permute.xlu0 %2073
        %2076 = vset.pattern.permute.xlu0 8
        %2077 = vperm.xlu0 %2076, %v1087
        %v2078 = vpop.permute.xlu0 %2077
        %2080 = vset.pattern.permute.xlu0 8
        %2081 = vperm.xlu0 %2080, %v1091
        %v2082 = vpop.permute.xlu0 %2081
        %2084 = vset.pattern.permute.xlu0 8
        %2085 = vperm.xlu0 %2084, %v1095
        %v2086 = vpop.permute.xlu0 %2085
        %2088 = vset.pattern.permute.xlu0 8
        %2089 = vperm.xlu0 %2088, %v1099
        %v2090 = vpop.permute.xlu0 %2089
        %2092 = vset.pattern.permute.xlu0 8
        %2093 = vperm.xlu0 %2092, %v1103
        %v2094 = vpop.permute.xlu0 %2093
        %2096 = vset.pattern.permute.xlu0 8
        %2097 = vperm.xlu0 %2096, %v1107
        %v2098 = vpop.permute.xlu0 %2097
        %2100 = vset.pattern.permute.xlu0 8
        %2101 = vperm.xlu0 %2100, %v1111
        %v2102 = vpop.permute.xlu0 %2101
        %v2104 = vmul.f32 %v2056, %v2074
        %v2105 = vmul.f32 %v2057, %v2074
        %v2106 = vmul.f32 %v2058, %v2078
        %v2107 = vmul.f32 %v2059, %v2078
        %v2108 = vmul.f32 %v2060, %v2082
        %v2109 = vmul.f32 %v2061, %v2082
        %v2110 = vmul.f32 %v2062, %v2086
        %v2111 = vmul.f32 %v2063, %v2086
        %v2112 = vmul.f32 %v2064, %v2090
        %v2113 = vmul.f32 %v2065, %v2090
        %v2114 = vmul.f32 %v2066, %v2094
        %v2115 = vmul.f32 %v2067, %v2094
        %v2116 = vmul.f32 %v2068, %v2098
        %v2117 = vmul.f32 %v2069, %v2098
        %v2118 = vmul.f32 %v2070, %v2102
        %v2119 = vmul.f32 %v2071, %v2102
        %2136 = vrot.lane.b32.xlu0 %v2104, 126
        %v2137 = vpop.permute.xlu0 %2136
        %2138 = vrot.lane.b32.xlu0 %v2105, 126
        %v2139 = vpop.permute.xlu0 %2138
        %2140 = vrot.lane.b32.xlu0 %v2106, 126
        %v2141 = vpop.permute.xlu0 %2140
        %2142 = vrot.lane.b32.xlu0 %v2107, 126
        %v2143 = vpop.permute.xlu0 %2142
        %2144 = vrot.lane.b32.xlu0 %v2108, 126
        %v2145 = vpop.permute.xlu0 %2144
        %2146 = vrot.lane.b32.xlu0 %v2109, 126
        %v2147 = vpop.permute.xlu0 %2146
        %2148 = vrot.lane.b32.xlu0 %v2110, 126
        %v2149 = vpop.permute.xlu0 %2148
        %2150 = vrot.lane.b32.xlu0 %v2111, 126
        %v2151 = vpop.permute.xlu0 %2150
        %2152 = vrot.lane.b32.xlu0 %v2112, 126
        %v2153 = vpop.permute.xlu0 %2152
        %2154 = vrot.lane.b32.xlu0 %v2113, 126
        %v2155 = vpop.permute.xlu0 %2154
        %2156 = vrot.lane.b32.xlu0 %v2114, 126
        %v2157 = vpop.permute.xlu0 %2156
        %2158 = vrot.lane.b32.xlu0 %v2115, 126
        %v2159 = vpop.permute.xlu0 %2158
        %2160 = vrot.lane.b32.xlu0 %v2116, 126
        %v2161 = vpop.permute.xlu0 %2160
        %2162 = vrot.lane.b32.xlu0 %v2117, 126
        %v2163 = vpop.permute.xlu0 %2162
        %2164 = vrot.lane.b32.xlu0 %v2118, 126
        %v2165 = vpop.permute.xlu0 %2164
        %2166 = vrot.lane.b32.xlu0 %v2119, 126
        %v2167 = vpop.permute.xlu0 %2166
        %v2184 = vadd.f32 %v2040, %v2137
        %v2185 = vadd.f32 %v2041, %v2139
        %v2186 = vadd.f32 %v2042, %v2141
        %v2187 = vadd.f32 %v2043, %v2143
        %v2188 = vadd.f32 %v2044, %v2145
        %v2189 = vadd.f32 %v2045, %v2147
        %v2190 = vadd.f32 %v2046, %v2149
        %v2191 = vadd.f32 %v2047, %v2151
        %v2192 = vadd.f32 %v2048, %v2153
        %v2193 = vadd.f32 %v2049, %v2155
        %v2194 = vadd.f32 %v2050, %v2157
        %v2195 = vadd.f32 %v2051, %v2159
        %v2196 = vadd.f32 %v2052, %v2161
        %v2197 = vadd.f32 %v2053, %v2163
        %v2198 = vadd.f32 %v2054, %v2165
        %v2199 = vadd.f32 %v2055, %v2167
        %v2200 = vld [vmem:[%s6] sm:$0xff]
        %v2202 = vcombine.high %v2200, %v2200
        %v2204 = vunpack.c.l.s4 1966171168
        %v2205 = vunpack.c.0.s8 %v2204
        %v2206 = vlaneseq
        %v2207 = vshrl.u32 %v2206, 7
        %v2208 = vsub.s32 %v2205, %v2207
        %v2209 = vrot.slane %v2200, %v2208
        %v2211 = vunpack.c.l.s4 1966171168
        %v2212 = vunpack.c.0.s8 %v2211
        %v2213 = vlaneseq
        %v2214 = vshrl.u32 %v2213, 7
        %v2215 = vsub.s32 %v2212, %v2214
        %v2216 = vrot.slane %v2202, %v2215
        %v2217 = vcombine.high %v2209, %v2209
        %v2218 = vcombine.high %v2216, %v2216
        %v2220 = vunpack.c.l.s4 1966171168
        %v2221 = vunpack.c.0.s8 %v2220
        %v2222 = vlaneseq
        %v2223 = vshrl.u32 %v2222, 7
        %v2224 = vsub.s32 %v2221, %v2223
        %v2225 = vrot.slane %v2209, %v2224
        %v2227 = vunpack.c.l.s4 1966171168
        %v2228 = vunpack.c.0.s8 %v2227
        %v2229 = vlaneseq
        %v2230 = vshrl.u32 %v2229, 7
        %v2231 = vsub.s32 %v2228, %v2230
        %v2232 = vrot.slane %v2216, %v2231
        %v2234 = vunpack.c.l.s4 1966171168
        %v2235 = vunpack.c.0.s8 %v2234
        %v2236 = vlaneseq
        %v2237 = vshrl.u32 %v2236, 7
        %v2238 = vsub.s32 %v2235, %v2237
        %v2239 = vrot.slane %v2217, %v2238
        %v2241 = vunpack.c.l.s4 1966171168
        %v2242 = vunpack.c.0.s8 %v2241
        %v2243 = vlaneseq
        %v2244 = vshrl.u32 %v2243, 7
        %v2245 = vsub.s32 %v2242, %v2244
        %v2246 = vrot.slane %v2218, %v2245
        %v2247 = vcombine.high %v2225, %v2225
        %v2248 = vcombine.high %v2232, %v2232
        %v2249 = vcombine.high %v2239, %v2239
        %v2250 = vcombine.high %v2246, %v2246
        %v2251 = vlaneseq
        %v2252 = vshrl.u32 %v2251, 7
        %v2253 = vsub.s32 0, %v2252
        %v2254 = vrot.slane %v2225, %v2253
        %v2255 = vlaneseq
        %v2256 = vshrl.u32 %v2255, 7
        %v2257 = vsub.s32 0, %v2256
        %v2258 = vrot.slane %v2239, %v2257
        %v2259 = vlaneseq
        %v2260 = vshrl.u32 %v2259, 7
        %v2261 = vsub.s32 0, %v2260
        %v2262 = vrot.slane %v2247, %v2261
        %v2263 = vlaneseq
        %v2264 = vshrl.u32 %v2263, 7
        %v2265 = vsub.s32 0, %v2264
        %v2266 = vrot.slane %v2249, %v2265
        %v2267 = vlaneseq
        %v2268 = vshrl.u32 %v2267, 7
        %v2269 = vsub.s32 0, %v2268
        %v2270 = vrot.slane %v2232, %v2269
        %v2271 = vlaneseq
        %v2272 = vshrl.u32 %v2271, 7
        %v2273 = vsub.s32 0, %v2272
        %v2274 = vrot.slane %v2246, %v2273
        %v2275 = vlaneseq
        %v2276 = vshrl.u32 %v2275, 7
        %v2277 = vsub.s32 0, %v2276
        %v2278 = vrot.slane %v2248, %v2277
        %v2279 = vlaneseq
        %v2280 = vshrl.u32 %v2279, 7
        %v2281 = vsub.s32 0, %v2280
        %v2282 = vrot.slane %v2250, %v2281
        %2283 = vset.pattern.permute.xlu0 0
        %2284 = vperm.xlu0 %2283, %v2254
        %v2285 = vpop.permute.xlu0 %2284
        %2287 = vset.pattern.permute.xlu0 0
        %2288 = vperm.xlu0 %2287, %v2258
        %v2289 = vpop.permute.xlu0 %2288
        %2291 = vset.pattern.permute.xlu0 0
        %2292 = vperm.xlu0 %2291, %v2262
        %v2293 = vpop.permute.xlu0 %2292
        %2295 = vset.pattern.permute.xlu0 0
        %2296 = vperm.xlu0 %2295, %v2266
        %v2297 = vpop.permute.xlu0 %2296
        %2299 = vset.pattern.permute.xlu0 0
        %2300 = vperm.xlu0 %2299, %v2270
        %v2301 = vpop.permute.xlu0 %2300
        %2303 = vset.pattern.permute.xlu0 0
        %2304 = vperm.xlu0 %2303, %v2274
        %v2305 = vpop.permute.xlu0 %2304
        %2307 = vset.pattern.permute.xlu0 0
        %2308 = vperm.xlu0 %2307, %v2278
        %v2309 = vpop.permute.xlu0 %2308
        %2311 = vset.pattern.permute.xlu0 0
        %2312 = vperm.xlu0 %2311, %v2282
        %v2313 = vpop.permute.xlu0 %2312
        %v2315 = vadd.f32 %v2184, %v2285
        %v2316 = vadd.f32 %v2185, %v2285
        %v2317 = vadd.f32 %v2186, %v2289
        %v2318 = vadd.f32 %v2187, %v2289
        %v2319 = vadd.f32 %v2188, %v2293
        %v2320 = vadd.f32 %v2189, %v2293
        %v2321 = vadd.f32 %v2190, %v2297
        %v2322 = vadd.f32 %v2191, %v2297
        %v2323 = vadd.f32 %v2192, %v2301
        %v2324 = vadd.f32 %v2193, %v2301
        %v2325 = vadd.f32 %v2194, %v2305
        %v2326 = vadd.f32 %v2195, %v2305
        %v2327 = vadd.f32 %v2196, %v2309
        %v2328 = vadd.f32 %v2197, %v2309
        %v2329 = vadd.f32 %v2198, %v2313
        %v2330 = vadd.f32 %v2199, %v2313
        %v2331 = vcombine.low %v2315, %v2319
        %v2332 = vcombine.high %v2315, %v2319
        %v2334 = vunpack.c.l.s4 1983009808
        %v2335 = vunpack.c.0.s8 %v2334
        %v2336 = vlaneseq
        %v2337 = vshrl.u32 %v2336, 7
        %v2338 = vsub.s32 %v2335, %v2337
        %v2339 = vrot.slane %v2331, %v2338
        %v2341 = vunpack.c.l.s4 1983009808
        %v2342 = vunpack.c.0.s8 %v2341
        %v2343 = vlaneseq
        %v2344 = vshrl.u32 %v2343, 7
        %v2345 = vsub.s32 %v2342, %v2344
        %v2346 = vrot.slane %v2332, %v2345
        %v2347 = vcombine.low %v2317, %v2321
        %v2348 = vcombine.high %v2317, %v2321
        %v2350 = vunpack.c.l.s4 1983009808
        %v2351 = vunpack.c.0.s8 %v2350
        %v2352 = vlaneseq
        %v2353 = vshrl.u32 %v2352, 7
        %v2354 = vsub.s32 %v2351, %v2353
        %v2355 = vrot.slane %v2347, %v2354
        %v2357 = vunpack.c.l.s4 1983009808
        %v2358 = vunpack.c.0.s8 %v2357
        %v2359 = vlaneseq
        %v2360 = vshrl.u32 %v2359, 7
        %v2361 = vsub.s32 %v2358, %v2360
        %v2362 = vrot.slane %v2348, %v2361
        %v2363 = vcombine.low %v2323, %v2327
        %v2364 = vcombine.high %v2323, %v2327
        %v2366 = vunpack.c.l.s4 1983009808
        %v2367 = vunpack.c.0.s8 %v2366
        %v2368 = vlaneseq
        %v2369 = vshrl.u32 %v2368, 7
        %v2370 = vsub.s32 %v2367, %v2369
        %v2371 = vrot.slane %v2363, %v2370
        %v2373 = vunpack.c.l.s4 1983009808
        %v2374 = vunpack.c.0.s8 %v2373
        %v2375 = vlaneseq
        %v2376 = vshrl.u32 %v2375, 7
        %v2377 = vsub.s32 %v2374, %v2376
        %v2378 = vrot.slane %v2364, %v2377
        %v2379 = vcombine.low %v2325, %v2329
        %v2380 = vcombine.high %v2325, %v2329
        %v2382 = vunpack.c.l.s4 1983009808
        %v2383 = vunpack.c.0.s8 %v2382
        %v2384 = vlaneseq
        %v2385 = vshrl.u32 %v2384, 7
        %v2386 = vsub.s32 %v2383, %v2385
        %v2387 = vrot.slane %v2379, %v2386
        %v2389 = vunpack.c.l.s4 1983009808
        %v2390 = vunpack.c.0.s8 %v2389
        %v2391 = vlaneseq
        %v2392 = vshrl.u32 %v2391, 7
        %v2393 = vsub.s32 %v2390, %v2392
        %v2394 = vrot.slane %v2380, %v2393
        %v2395 = vcombine.low %v2339, %v2355
        %v2396 = vcombine.high %v2339, %v2355
        %v2398 = vunpack.c.l.s4 1934713408
        %v2399 = vunpack.c.0.s8 %v2398
        %v2400 = vlaneseq
        %v2401 = vshrl.u32 %v2400, 7
        %v2402 = vsub.s32 %v2399, %v2401
        %v2403 = vrot.slane %v2395, %v2402
        %v2405 = vunpack.c.l.s4 1934713408
        %v2406 = vunpack.c.0.s8 %v2405
        %v2407 = vlaneseq
        %v2408 = vshrl.u32 %v2407, 7
        %v2409 = vsub.s32 %v2406, %v2408
        %v2410 = vrot.slane %v2396, %v2409
        %v2411 = vcombine.low %v2346, %v2362
        %v2412 = vcombine.high %v2346, %v2362
        %v2414 = vunpack.c.l.s4 1934713408
        %v2415 = vunpack.c.0.s8 %v2414
        %v2416 = vlaneseq
        %v2417 = vshrl.u32 %v2416, 7
        %v2418 = vsub.s32 %v2415, %v2417
        %v2419 = vrot.slane %v2411, %v2418
        %v2421 = vunpack.c.l.s4 1934713408
        %v2422 = vunpack.c.0.s8 %v2421
        %v2423 = vlaneseq
        %v2424 = vshrl.u32 %v2423, 7
        %v2425 = vsub.s32 %v2422, %v2424
        %v2426 = vrot.slane %v2412, %v2425
        %v2427 = vcombine.low %v2371, %v2387
        %v2428 = vcombine.high %v2371, %v2387
        %v2430 = vunpack.c.l.s4 1934713408
        %v2431 = vunpack.c.0.s8 %v2430
        %v2432 = vlaneseq
        %v2433 = vshrl.u32 %v2432, 7
        %v2434 = vsub.s32 %v2431, %v2433
        %v2435 = vrot.slane %v2427, %v2434
        %v2437 = vunpack.c.l.s4 1934713408
        %v2438 = vunpack.c.0.s8 %v2437
        %v2439 = vlaneseq
        %v2440 = vshrl.u32 %v2439, 7
        %v2441 = vsub.s32 %v2438, %v2440
        %v2442 = vrot.slane %v2428, %v2441
        %v2443 = vcombine.low %v2378, %v2394
        %v2444 = vcombine.high %v2378, %v2394
        %v2446 = vunpack.c.l.s4 1934713408
        %v2447 = vunpack.c.0.s8 %v2446
        %v2448 = vlaneseq
        %v2449 = vshrl.u32 %v2448, 7
        %v2450 = vsub.s32 %v2447, %v2449
        %v2451 = vrot.slane %v2443, %v2450
        %v2453 = vunpack.c.l.s4 1934713408
        %v2454 = vunpack.c.0.s8 %v2453
        %v2455 = vlaneseq
        %v2456 = vshrl.u32 %v2455, 7
        %v2457 = vsub.s32 %v2454, %v2456
        %v2458 = vrot.slane %v2444, %v2457
        %v2459 = vcombine.low %v2403, %v2435
        %v2460 = vcombine.high %v2403, %v2435
        %v2461 = vcombine.low %v2410, %v2442
        %v2462 = vcombine.high %v2410, %v2442
        %v2463 = vcombine.low %v2419, %v2451
        %v2464 = vcombine.high %v2419, %v2451
        %v2465 = vcombine.low %v2426, %v2458
        %v2466 = vcombine.high %v2426, %v2458
        %v2467 = vcombine.low %v2316, %v2320
        %v2468 = vcombine.high %v2316, %v2320
        %v2470 = vunpack.c.l.s4 1983009808
        %v2471 = vunpack.c.0.s8 %v2470
        %v2472 = vlaneseq
        %v2473 = vshrl.u32 %v2472, 7
        %v2474 = vsub.s32 %v2471, %v2473
        %v2475 = vrot.slane %v2467, %v2474
        %v2477 = vunpack.c.l.s4 1983009808
        %v2478 = vunpack.c.0.s8 %v2477
        %v2479 = vlaneseq
        %v2480 = vshrl.u32 %v2479, 7
        %v2481 = vsub.s32 %v2478, %v2480
        %v2482 = vrot.slane %v2468, %v2481
        %v2483 = vcombine.low %v2318, %v2322
        %v2484 = vcombine.high %v2318, %v2322
        %v2486 = vunpack.c.l.s4 1983009808
        %v2487 = vunpack.c.0.s8 %v2486
        %v2488 = vlaneseq
        %v2489 = vshrl.u32 %v2488, 7
        %v2490 = vsub.s32 %v2487, %v2489
        %v2491 = vrot.slane %v2483, %v2490
        %v2493 = vunpack.c.l.s4 1983009808
        %v2494 = vunpack.c.0.s8 %v2493
        %v2495 = vlaneseq
        %v2496 = vshrl.u32 %v2495, 7
        %v2497 = vsub.s32 %v2494, %v2496
        %v2498 = vrot.slane %v2484, %v2497
        %v2499 = vcombine.low %v2324, %v2328
        %v2500 = vcombine.high %v2324, %v2328
        %v2502 = vunpack.c.l.s4 1983009808
        %v2503 = vunpack.c.0.s8 %v2502
        %v2504 = vlaneseq
        %v2505 = vshrl.u32 %v2504, 7
        %v2506 = vsub.s32 %v2503, %v2505
        %v2507 = vrot.slane %v2499, %v2506
        %v2509 = vunpack.c.l.s4 1983009808
        %v2510 = vunpack.c.0.s8 %v2509
        %v2511 = vlaneseq
        %v2512 = vshrl.u32 %v2511, 7
        %v2513 = vsub.s32 %v2510, %v2512
        %v2514 = vrot.slane %v2500, %v2513
        %v2515 = vcombine.low %v2326, %v2330
        %v2516 = vcombine.high %v2326, %v2330
        %v2518 = vunpack.c.l.s4 1983009808
        %v2519 = vunpack.c.0.s8 %v2518
        %v2520 = vlaneseq
        %v2521 = vshrl.u32 %v2520, 7
        %v2522 = vsub.s32 %v2519, %v2521
        %v2523 = vrot.slane %v2515, %v2522
        %v2525 = vunpack.c.l.s4 1983009808
        %v2526 = vunpack.c.0.s8 %v2525
        %v2527 = vlaneseq
        %v2528 = vshrl.u32 %v2527, 7
        %v2529 = vsub.s32 %v2526, %v2528
        %v2530 = vrot.slane %v2516, %v2529
        %v2531 = vcombine.low %v2475, %v2491
        %v2532 = vcombine.high %v2475, %v2491
        %v2534 = vunpack.c.l.s4 1934713408
        %v2535 = vunpack.c.0.s8 %v2534
        %v2536 = vlaneseq
        %v2537 = vshrl.u32 %v2536, 7
        %v2538 = vsub.s32 %v2535, %v2537
        %v2539 = vrot.slane %v2531, %v2538
        %v2541 = vunpack.c.l.s4 1934713408
        %v2542 = vunpack.c.0.s8 %v2541
        %v2543 = vlaneseq
        %v2544 = vshrl.u32 %v2543, 7
        %v2545 = vsub.s32 %v2542, %v2544
        %v2546 = vrot.slane %v2532, %v2545
        %v2547 = vcombine.low %v2482, %v2498
        %v2548 = vcombine.high %v2482, %v2498
        %v2550 = vunpack.c.l.s4 1934713408
        %v2551 = vunpack.c.0.s8 %v2550
        %v2552 = vlaneseq
        %v2553 = vshrl.u32 %v2552, 7
        %v2554 = vsub.s32 %v2551, %v2553
        %v2555 = vrot.slane %v2547, %v2554
        %v2557 = vunpack.c.l.s4 1934713408
        %v2558 = vunpack.c.0.s8 %v2557
        %v2559 = vlaneseq
        %v2560 = vshrl.u32 %v2559, 7
        %v2561 = vsub.s32 %v2558, %v2560
        %v2562 = vrot.slane %v2548, %v2561
        %v2563 = vcombine.low %v2507, %v2523
        %v2564 = vcombine.high %v2507, %v2523
        %v2566 = vunpack.c.l.s4 1934713408
        %v2567 = vunpack.c.0.s8 %v2566
        %v2568 = vlaneseq
        %v2569 = vshrl.u32 %v2568, 7
        %v2570 = vsub.s32 %v2567, %v2569
        %v2571 = vrot.slane %v2563, %v2570
        %v2573 = vunpack.c.l.s4 1934713408
        %v2574 = vunpack.c.0.s8 %v2573
        %v2575 = vlaneseq
        %v2576 = vshrl.u32 %v2575, 7
        %v2577 = vsub.s32 %v2574, %v2576
        %v2578 = vrot.slane %v2564, %v2577
        %v2579 = vcombine.low %v2514, %v2530
        %v2580 = vcombine.high %v2514, %v2530
        %v2582 = vunpack.c.l.s4 1934713408
        %v2583 = vunpack.c.0.s8 %v2582
        %v2584 = vlaneseq
        %v2585 = vshrl.u32 %v2584, 7
        %v2586 = vsub.s32 %v2583, %v2585
        %v2587 = vrot.slane %v2579, %v2586
        %v2589 = vunpack.c.l.s4 1934713408
        %v2590 = vunpack.c.0.s8 %v2589
        %v2591 = vlaneseq
        %v2592 = vshrl.u32 %v2591, 7
        %v2593 = vsub.s32 %v2590, %v2592
        %v2594 = vrot.slane %v2580, %v2593
        %v2595 = vcombine.low %v2539, %v2571
        %v2596 = vcombine.high %v2539, %v2571
        %v2597 = vcombine.low %v2546, %v2578
        %v2598 = vcombine.high %v2546, %v2578
        %v2599 = vcombine.low %v2555, %v2587
        %v2600 = vcombine.high %v2555, %v2587
        %v2601 = vcombine.low %v2562, %v2594
        %v2602 = vcombine.high %v2562, %v2594
        %2604 = vrot.lane.b32.xlu0 %v2460, 16
        %v2605 = vpop.permute.xlu0 %2604
        %2608 = vrot.lane.b32.xlu0 %v2461, 32
        %v2609 = vpop.permute.xlu0 %2608
        %2612 = vrot.lane.b32.xlu0 %v2462, 48
        %v2613 = vpop.permute.xlu0 %2612
        %2616 = vrot.lane.b32.xlu0 %v2463, 64
        %v2617 = vpop.permute.xlu0 %2616
        %2620 = vrot.lane.b32.xlu0 %v2464, 80
        %v2621 = vpop.permute.xlu0 %2620
        %2624 = vrot.lane.b32.xlu0 %v2465, 96
        %v2625 = vpop.permute.xlu0 %2624
        %2628 = vrot.lane.b32.xlu0 %v2466, 112
        %v2629 = vpop.permute.xlu0 %2628
        %2632 = vrot.lane.b32.xlu0 %v2596, 16
        %v2633 = vpop.permute.xlu0 %2632
        %2636 = vrot.lane.b32.xlu0 %v2597, 32
        %v2637 = vpop.permute.xlu0 %2636
        %2640 = vrot.lane.b32.xlu0 %v2598, 48
        %v2641 = vpop.permute.xlu0 %2640
        %2644 = vrot.lane.b32.xlu0 %v2599, 64
        %v2645 = vpop.permute.xlu0 %2644
        %2648 = vrot.lane.b32.xlu0 %v2600, 80
        %v2649 = vpop.permute.xlu0 %2648
        %2652 = vrot.lane.b32.xlu0 %v2601, 96
        %v2653 = vpop.permute.xlu0 %2652
        %2656 = vrot.lane.b32.xlu0 %v2602, 112
        %v2657 = vpop.permute.xlu0 %2656
        %vm2659 = vcmask 130048
        %v2660 = vsel %vm2659, %v2459, %v2605
        %vm2661 = vcmask 261120
        %v2662 = vsel %vm2661, %v2660, %v2609
        %vm2663 = vcmask 392192
        %v2664 = vsel %vm2663, %v2662, %v2613
        %vm2665 = vcmask 523264
        %v2666 = vsel %vm2665, %v2664, %v2617
        %vm2667 = vcmask 654336
        %v2668 = vsel %vm2667, %v2666, %v2621
        %vm2669 = vcmask 785408
        %v2670 = vsel %vm2669, %v2668, %v2625
        %vm2671 = vcmask 916480
        %v2672 = vsel %vm2671, %v2670, %v2629
        %v2673 = vsel %vm2659, %v2595, %v2633
        %v2674 = vsel %vm2661, %v2673, %v2637
        %v2675 = vsel %vm2663, %v2674, %v2641
        %v2676 = vsel %vm2665, %v2675, %v2645
        %v2677 = vsel %vm2667, %v2676, %v2649
        %v2678 = vsel %vm2669, %v2677, %v2653
        %v2679 = vsel %vm2671, %v2678, %v2657
        %v2680 = vld [vmem:[%s7] sm:$0xff]
        %v2681 = vld [vmem:[%s8] sm:$0xff]
        %v2682 = vadd.f32 %v2672, %v2679
        %2683 = vadd.xlane.f32.xlu0 %v2682
        %v2684 = vpop.xlane.xlu0 %2683
        %v2685 = vmul.f32 %v2684, %v558
        %v2686 = vsub.f32 %v2672, %v2685
        %v2687 = vsub.f32 %v2679, %v2685
        %v2688 = vmul.f32 %v2686, %v2686
        %v2689 = vmul.f32 %v2687, %v2687
        %v2690 = vadd.f32 %v2688, %v2689
        %2691 = vadd.xlane.f32.xlu0 %v2690
        %v2692 = vpop.xlane.xlu0 %2691
        %v2693 = vmul.f32 %v2692, %v558
        %v2694 = vadd.f32 %v2693, 1e-05
        %v2695 = vrsqrt.pop %v2694
        %v2696 = vmul.f32 %v2686, %v2695
        %v2697 = vmul.f32 %v2687, %v2695
        %2699 = vset.pattern.permute.xlu0 0
        %2700 = vperm.xlu0 %2699, %v2680
        %v2701 = vpop.permute.xlu0 %2700
        %v2703 = vmul.f32 %v2696, %v2701
        %v2704 = vmul.f32 %v2697, %v2701
        %2706 = vset.pattern.permute.xlu0 0
        %2707 = vperm.xlu0 %2706, %v2681
        %v2708 = vpop.permute.xlu0 %2707
        %v2710 = vadd.f32 %v2703, %v2708
        %v2711 = vadd.f32 %v2704, %v2708
        %v2712 = vmax.f32 %v2710, 0.0
        %v2713 = vmax.f32 %v2711, 0.0
        %v2714 = vmin.f32 %v2712, 6.0
        %v2715 = vmin.f32 %v2713, 6.0
        %v2716 = vld [vmem:[%s9] sm:$0xf]
        %v2717 = vld [vmem:[%s10] sm:$0xf]
        %2719 = vset.pattern.permute.xlu0 0
        %2720 = vperm.xlu0 %2719, %v2716
        %v2721 = vpop.permute.xlu0 %2720
        %v2723 = vlaneseq
        %v2724 = vshrl.u32 %v2723, 7
        %v2725 = vsub.s32 0, %v2724
        %v2726 = vrot.slane %v2714, %v2725
        %v2727 = vlaneseq
        %v2728 = vshrl.u32 %v2727, 7
        %v2729 = vsub.s32 0, %v2728
        %v2730 = vrot.slane %v2715, %v2729
        %v2731 = vmul.f32 %v2721, %v2726
        %v2732 = vmul.f32 %v2721, %v2730
        %2733 = vset.pattern.permute.xlu0 1
        %2734 = vperm.xlu0 %2733, %v2716
        %v2735 = vpop.permute.xlu0 %2734
        %v2737 = vlaneseq
        %v2738 = vshrl.u32 %v2737, 7
        %v2739 = vsub.s32 1, %v2738
        %v2740 = vrot.slane %v2714, %v2739
        %v2741 = vlaneseq
        %v2742 = vshrl.u32 %v2741, 7
        %v2743 = vsub.s32 1, %v2742
        %v2744 = vrot.slane %v2715, %v2743
        %v2745 = vmul.f32 %v2735, %v2740
        %v2746 = vmul.f32 %v2735, %v2744
        %v2747 = vadd.f32 %v2731, %v2745
        %v2748 = vadd.f32 %v2732, %v2746
        %2749 = vset.pattern.permute.xlu0 2
        %2750 = vperm.xlu0 %2749, %v2716
        %v2751 = vpop.permute.xlu0 %2750
        %v2753 = vlaneseq
        %v2754 = vshrl.u32 %v2753, 7
        %v2755 = vsub.s32 2, %v2754
        %v2756 = vrot.slane %v2714, %v2755
        %v2757 = vlaneseq
        %v2758 = vshrl.u32 %v2757, 7
        %v2759 = vsub.s32 2, %v2758
        %v2760 = vrot.slane %v2715, %v2759
        %v2761 = vmul.f32 %v2751, %v2756
        %v2762 = vmul.f32 %v2751, %v2760
        %v2763 = vadd.f32 %v2747, %v2761
        %v2764 = vadd.f32 %v2748, %v2762
        %2765 = vset.pattern.permute.xlu0 3
        %2766 = vperm.xlu0 %2765, %v2716
        %v2767 = vpop.permute.xlu0 %2766
        %v2769 = vlaneseq
        %v2770 = vshrl.u32 %v2769, 7
        %v2771 = vsub.s32 3, %v2770
        %v2772 = vrot.slane %v2714, %v2771
        %v2773 = vlaneseq
        %v2774 = vshrl.u32 %v2773, 7
        %v2775 = vsub.s32 3, %v2774
        %v2776 = vrot.slane %v2715, %v2775
        %v2777 = vmul.f32 %v2767, %v2772
        %v2778 = vmul.f32 %v2767, %v2776
        %v2779 = vadd.f32 %v2763, %v2777
        %v2780 = vadd.f32 %v2764, %v2778
        %2781 = vset.pattern.permute.xlu0 4
        %2782 = vperm.xlu0 %2781, %v2716
        %v2783 = vpop.permute.xlu0 %2782
        %v2785 = vlaneseq
        %v2786 = vshrl.u32 %v2785, 7
        %v2787 = vsub.s32 4, %v2786
        %v2788 = vrot.slane %v2714, %v2787
        %v2789 = vlaneseq
        %v2790 = vshrl.u32 %v2789, 7
        %v2791 = vsub.s32 4, %v2790
        %v2792 = vrot.slane %v2715, %v2791
        %v2793 = vmul.f32 %v2783, %v2788
        %v2794 = vmul.f32 %v2783, %v2792
        %v2795 = vadd.f32 %v2779, %v2793
        %v2796 = vadd.f32 %v2780, %v2794
        %2797 = vset.pattern.permute.xlu0 5
        %2798 = vperm.xlu0 %2797, %v2716
        %v2799 = vpop.permute.xlu0 %2798
        %v2801 = vlaneseq
        %v2802 = vshrl.u32 %v2801, 7
        %v2803 = vsub.s32 5, %v2802
        %v2804 = vrot.slane %v2714, %v2803
        %v2805 = vlaneseq
        %v2806 = vshrl.u32 %v2805, 7
        %v2807 = vsub.s32 5, %v2806
        %v2808 = vrot.slane %v2715, %v2807
        %v2809 = vmul.f32 %v2799, %v2804
        %v2810 = vmul.f32 %v2799, %v2808
        %v2811 = vadd.f32 %v2795, %v2809
        %v2812 = vadd.f32 %v2796, %v2810
        %2813 = vset.pattern.permute.xlu0 6
        %2814 = vperm.xlu0 %2813, %v2716
        %v2815 = vpop.permute.xlu0 %2814
        %v2817 = vlaneseq
        %v2818 = vshrl.u32 %v2817, 7
        %v2819 = vsub.s32 6, %v2818
        %v2820 = vrot.slane %v2714, %v2819
        %v2821 = vlaneseq
        %v2822 = vshrl.u32 %v2821, 7
        %v2823 = vsub.s32 6, %v2822
        %v2824 = vrot.slane %v2715, %v2823
        %v2825 = vmul.f32 %v2815, %v2820
        %v2826 = vmul.f32 %v2815, %v2824
        %v2827 = vadd.f32 %v2811, %v2825
        %v2828 = vadd.f32 %v2812, %v2826
        %2829 = vset.pattern.permute.xlu0 7
        %2830 = vperm.xlu0 %2829, %v2716
        %v2831 = vpop.permute.xlu0 %2830
        %v2833 = vlaneseq
        %v2834 = vshrl.u32 %v2833, 7
        %v2835 = vsub.s32 7, %v2834
        %v2836 = vrot.slane %v2714, %v2835
        %v2837 = vlaneseq
        %v2838 = vshrl.u32 %v2837, 7
        %v2839 = vsub.s32 7, %v2838
        %v2840 = vrot.slane %v2715, %v2839
        %v2841 = vmul.f32 %v2831, %v2836
        %v2842 = vmul.f32 %v2831, %v2840
        %v2843 = vadd.f32 %v2827, %v2841
        %v2844 = vadd.f32 %v2828, %v2842
        %2846 = vset.pattern.permute.xlu0 0
        %2847 = vperm.xlu0 %2846, %v2717
        %v2848 = vpop.permute.xlu0 %2847
        %v2850 = vadd.f32 %v2843, %v2848
        %v2851 = vadd.f32 %v2844, %v2848
        %v2852 = vld [vmem:[%s11] sm:$0xf]
        %v2853 = vld [vmem:[%s12] sm:$0xf]
        %vm2854 = vcmask 1043456
        %v2855 = vsel %vm2854, %v2850, 0.0
        %v2856 = vsel %vm2854, %v2851, 0.0
        %v2857 = vadd.f32 %v2855, %v2856
        %2858 = vadd.xlane.f32.xlu0 %v2857
        %v2859 = vpop.xlane.xlu0 %2858
        %v2860 = vmul.f32 %v2859, %v558
        %v2861 = vsub.f32 %v2850, %v2860
        %v2862 = vsub.f32 %v2851, %v2860
        %v2863 = vmul.f32 %v2861, %v2861
        %v2864 = vmul.f32 %v2862, %v2862
        %v2865 = vsel %vm2854, %v2863, 0.0
        %v2866 = vsel %vm2854, %v2864, 0.0
        %v2867 = vadd.f32 %v2865, %v2866
        %2868 = vadd.xlane.f32.xlu0 %v2867
        %v2869 = vpop.xlane.xlu0 %2868
        %v2870 = vmul.f32 %v2869, %v558
        %v2871 = vadd.f32 %v2870, 1e-05
        %v2872 = vrsqrt.pop %v2871
        %v2873 = vmul.f32 %v2861, %v2872
        %v2874 = vmul.f32 %v2862, %v2872
        %2876 = vset.pattern.permute.xlu0 0
        %2877 = vperm.xlu0 %2876, %v2852
        %v2878 = vpop.permute.xlu0 %2877
        %v2880 = vmul.f32 %v2873, %v2878
        %v2881 = vmul.f32 %v2874, %v2878
        %2883 = vset.pattern.permute.xlu0 0
        %2884 = vperm.xlu0 %2883, %v2853
        %v2885 = vpop.permute.xlu0 %2884
        %v2887 = vadd.f32 %v2880, %v2885
        %v2888 = vadd.f32 %v2881, %v2885
        %v2889 = vcombine.high %v439, %v439
        %v2891 = vadd.f32 %v2887, %v439
        %v2892 = vadd.f32 %v2888, %v2889
        %v2895 = vcombine.low %v2891, %v2892
        %2897 = vst [vmem:[%s433] sm:$0xff] %v2895
        %s2898 = sand.u32 %s313, 1
        %s2899 = scalar_lea.sflag [#allocation4], %s2898
        %s2900 = sand.u32 %s313, 1
        %s2901 = smul.addr %s2900, 8
        %s2902 = scalar_lea.vmem [#allocation3], %s2901
        // Predicated region
        $region73: #{tpu_custom_call.1} parent=71 // pred_check
          %p2903 = pneg %p323
        $region74: #{tpu_custom_call.1} parent=71 // pred_check_branch
          %2905 = sbr.rel (%p2903) target = $region76
        $region75: #{tpu_custom_call.1} parent=71 // pred_region
          %s2907 = ssub.s32 128, 128
          %2908 = vsyncadd %s2899, %s2907
          %s2909 = smul.addr %s27, 2
          %s2910 = smul.addr %s2909, 64
          %s2911 = scalar_lea.hbm %s13, %s2910
          %s2913 = sshll.u32 %s2902, 4
          %s2914 = int_to_ptr.vmem [resolvable:$true] %s2913
          %2916 = dma.vmem_to_hbm [thread:$0]  %s2914, 128, %s2911, %s2899
        $region76: #{tpu_custom_call.1} parent=71 // pred_fallthru
          _
      $region72: #{tpu_custom_call.1} parent=5 // pred_fallthru
        _
      %p2917 = scmp.le.s32.totalorder 2, %s22
      // Predicated region
      $region77: #{tpu_custom_call.1} parent=5 // pred_check
        %p2918 = pneg %p2917
      $region78: #{tpu_custom_call.1} parent=5 // pred_check_branch
        %2920 = sbr.rel (%p2918) target = $region80
      $region79: #{tpu_custom_call.1} parent=5 // pred_region
        %s2921 = ssub.s32 %s22, 2
        // Predicated region
        $region81: #{tpu_custom_call.1} parent=79 // pred_check
          %p2922 = pneg %p329
        $region82: #{tpu_custom_call.1} parent=79 // pred_check_branch
          %2924 = sbr.rel (%p2922) target = $region84
        $region83: #{tpu_custom_call.1} parent=79 // pred_region
          %s2925 = sand.u32 %s314, 1
          %s2926 = scalar_lea.sflag [#allocation4], %s2925
          %s2927 = sand.u32 %s314, 1
          %s2928 = smul.addr %s2927, 8
          %s2929 = scalar_lea.vmem [#allocation3], %s2928
          %2930 = dma.done %s2926, 128
        $region84: #{tpu_custom_call.1} parent=79 // pred_fallthru
          _
      $region80: #{tpu_custom_call.1} parent=5 // pred_fallthru
        _
    $region6: #{tpu_custom_call.1} parent=1 // loop_footer
      %s26 = sadd.s32 1, %s22
    $region7: #{tpu_custom_call.1} parent=1 // loop_footer_branch
      %21 = sbr.rel target = $region3
    $region8: #{tpu_custom_call.1} parent=1 // loop_exit
      _
    %2931 = vsyncpa [#allocation4], 1
    %s2932 = scalar_lea.sflag [#allocation4], 1
    %2933 = vsyncpa %s2932, 1

</llo_original>
